<compile_context>
chip_gen: v6e
topology: v6e:2x2x1
jax: 0.10.0
libtpu: 0.0.40
codegen_flags: <defaults>
</compile_context>

<pallas_src>
import jax
import jax.numpy as jnp
from jax import lax
from jax.experimental import pallas as pl
from jax.experimental.pallas import tpu as pltpu


# --------------------------------------------------------------------------
# sizing helpers
# --------------------------------------------------------------------------
def _round_up(x, m):
    return (x + m - 1) // m * m


def _vmem_budget_bytes():
    """Generation-aware VMEM budget (~75% of physical; 48 MiB fallback)."""
    try:
        cap = int(pltpu.get_tpu_info().vmem_capacity_bytes)
    except Exception:
        cap = 64 * 1024 * 1024          # conservative: v7x physical per-TC VMEM
    return int(cap * 3 // 4)


def _vmem_estimate_bytes(B, TC, S, Hp, out_dim):
    f32, bf16 = 4, 2
    rows = B * TC
    x_chunk = 2 * rows * S * bf16                        # double-buffered input
    xw = rows * 4 * Hp * f32                             # chunk projection
    gate_tmps = 6 * B * 4 * Hp * f32                     # per-step temporaries
    weights = 2 * (S * 4 * Hp + Hp * 4 * Hp + Hp * Hp + Hp * out_dim) * bf16
    small = 2 * (4 * Hp + 4 * Hp + Hp + out_dim) * f32   # biases + BN stats
    state_scr = 2 * B * Hp * f32                         # h/c carries
    outs = 2 * (B * out_dim + 2 * B * Hp) * f32
    return x_chunk + xw + gate_tmps + weights + small + state_scr + outs


def _pick_time_chunk(T, B, S, Hp, out_dim, budget,
                     max_unroll=64, target_rows=256):
    """Largest legal time chunk: divisor of T, (sublane,lane)-legal block
    (16-row multiple for the bf16 input unless it is the full array), fits the
    VMEM budget, bounded static unroll; stop growing once B*TC fills the MXU."""
    best = None
    for tc in range(1, T + 1):
        if T % tc or tc > max_unroll:
            continue
        if tc != T and (B * tc) % 16 != 0:
            continue
        if _vmem_estimate_bytes(B, tc, S, Hp, out_dim) > budget:
            continue
        best = tc
        if B * tc >= target_rows:
            break
    if best is None:  # robust fallback: smallest legal divisor (tc == T always legal)
        best = min(tc for tc in range(1, T + 1)
                   if T % tc == 0 and (tc == T or (B * tc) % 16 == 0))
    return best


# --------------------------------------------------------------------------
# kernel
# --------------------------------------------------------------------------
def _critic_kernel(x_ref, h0_ref, c0_ref, wih_ref, whh_ref, b_ref,
                   gamma_ref, beta_ref, rmean_ref, rvar_ref,
                   w1_ref, b1_ref, w2_ref, b2_ref,
                   act_ref, hn_ref, cn_ref,
                   h_scr, c_scr):
    t = pl.program_id(0)
    n_chunks = pl.num_programs(0)
    B, Hp = h0_ref.shape
    rows = x_ref.shape[0]
    TC = rows // B

    @pl.when(t == 0)
    def _():
        h_scr[...] = h0_ref[...]
        c_scr[...] = c0_ref[...]

    # One bf16 MXU matmul projects the whole time chunk (bias folded in; the
    # 2x pre-scale of the tanh gate is already folded into the g-slab weights).
    xw = (jnp.dot(x_ref[...], wih_ref[...],
                  preferred_element_type=jnp.float32) + b_ref[...])

    whh = whh_ref[...]                                   # (Hp, 4Hp) bf16, hoisted

    h = h_scr[...]
    c = c_scr[...]
    # Fully unrolled serial recurrence: only h @ w_hh + gates on the chain.
    # TODO(synk): for very large B*4Hp tiles switch to lax.fori_loop with a
    # bounded unroll + VMEM xw scratch to cap vreg pressure.
    for s in range(TC):
        z = xw[s * B:(s + 1) * B, :] + jnp.dot(
            h.astype(jnp.bfloat16), whh, preferred_element_type=jnp.float32)
        # Single sigmoid pass over the packed gates; tanh(g) = 2*sigmoid(2g)-1.
        sg = jax.nn.sigmoid(z)
        i_g = sg[:, 0 * Hp:1 * Hp]                        # whole-vreg lane slabs
        f_g = sg[:, 1 * Hp:2 * Hp]
        g_g = 2.0 * sg[:, 2 * Hp:3 * Hp] - 1.0
        o_g = sg[:, 3 * Hp:4 * Hp]
        c = f_g * c + i_g * g_g
        h = o_g * jnp.tanh(c)
    h_scr[...] = h
    c_scr[...] = c

    @pl.when(t == n_chunks - 1)
    def _():
        hn_ref[...] = h
        cn_ref[...] = c

        # BatchNorm1d (eval): (x - mean) / sqrt(var + eps) * gamma + beta
        eps = jnp.float32(1e-5)
        inv_std = lax.rsqrt(rvar_ref[...] + eps)

        def bn(y):
            return (y - rmean_ref[...]) * inv_std * gamma_ref[...] + beta_ref[...]

        # output = batch_norm(lstm_out[:, -1, :]); for a 1-layer LSTM that is h_n
        y = bn(h)
        # TODO(synk): dropout is eval-mode identity; train-mode RNG masking not implemented.
        y = jnp.dot(y.astype(jnp.bfloat16), w1_ref[...],
                    preferred_element_type=jnp.float32) + b1_ref[...]
        y = jnp.maximum(y, jnp.float32(0.0))             # ReLU
        y = bn(y)                                        # same BN module reused in fc
        y = jnp.dot(y.astype(jnp.bfloat16), w2_ref[...],
                    preferred_element_type=jnp.float32) + b2_ref[...]
        act_ref[...] = jnp.tanh(y)


# --------------------------------------------------------------------------
# wrapper
# --------------------------------------------------------------------------
def lstm_critic_forward(state, hidden, kp):
    """state: (B, T, S) f32 ; hidden: (h0, c0) each (1, B, H); kp: pack_params()
    output.  Returns (action (B, 1, out_dim), (h_n (1,B,H), c_n (1,B,H)))."""
    h0, c0 = hidden
    B, T, S = state.shape
    H, Hp, out_dim = kp["H"], kp["Hp"], kp["out_dim"]

    budget = _vmem_budget_bytes()
    TC = _pick_time_chunk(T, B, S, Hp, out_dim, budget)
    n_chunks = T // TC

    # Time-major, flat, bf16 streamed input: row index = t*B + b.
    x2d = jnp.transpose(state, (1, 0, 2)).reshape(T * B, S).astype(jnp.bfloat16)

    h0p = jnp.pad(h0.reshape(B, H), ((0, 0), (0, Hp - H)))
    c0p = jnp.pad(c0.reshape(B, H), ((0, 0), (0, Hp - H)))

    const = lambda shape: pl.BlockSpec(shape, lambda t: (0, 0))
    # TODO(synk): pipeline_mode=pl.Buffered(1) on the constant operands would
    # halve their VMEM footprint; left off to stay conservative.
    grid_spec = pltpu.PrefetchScalarGridSpec(
        num_scalar_prefetch=0,
        grid=(n_chunks,),
        in_specs=[
            pl.BlockSpec((TC * B, S), lambda t: (t, 0)),     # streamed chunk
            const((B, Hp)), const((B, Hp)),                  # h0, c0
            const((S, 4 * Hp)), const((Hp, 4 * Hp)), const((1, 4 * Hp)),
            const((1, Hp)), const((1, Hp)), const((1, Hp)), const((1, Hp)),
            const((Hp, Hp)), const((1, Hp)),
            const((Hp, out_dim)), const((1, out_dim)),
        ],
        out_specs=[
            const((B, out_dim)),                             # action
            const((B, Hp)), const((B, Hp)),                  # h_n, c_n
        ],
        scratch_shapes=[pltpu.VMEM((B, Hp), jnp.float32),    # h carry
                        pltpu.VMEM((B, Hp), jnp.float32)],   # c carry
    )

    vmem_limit = int(min(budget,
                         max(16 * 1024 * 1024,
                             2 * _vmem_estimate_bytes(B, TC, S, Hp, out_dim))))

    # TODO(synk): on v7x add a leading "parallel" batch-tile grid axis (when B
    # supports 8-row tiles) to shard the recurrence across both TensorCores.
    action2d, hnp, cnp = pl.pallas_call(
        _critic_kernel,
        out_shape=(
            jax.ShapeDtypeStruct((B, out_dim), jnp.float32),
            jax.ShapeDtypeStruct((B, Hp), jnp.float32),
            jax.ShapeDtypeStruct((B, Hp), jnp.float32),
        ),
        grid_spec=grid_spec,
        input_output_aliases={1: 1, 2: 2},                   # h0->h_n, c0->c_n
        compiler_params=pltpu.CompilerParams(
            dimension_semantics=("arbitrary",),               # serial recurrence
            vmem_limit_bytes=vmem_limit),
    )(x2d, h0p, c0p,
      kp["w_ih"], kp["w_hh"], kp["b"],
      kp["gamma"], kp["beta"], kp["rmean"], kp["rvar"],
      kp["w1"], kp["b1"], kp["w2"], kp["b2"])

    action = action2d[:, None, :]                             # .unsqueeze(1)
    h_n = hnp[:, :H].reshape(1, B, H)
    c_n = cnp[:, :H].reshape(1, B, H)
    return action, (h_n, c_n)


# --------------------------------------------------------------------------
# parameter construction / packing
# --------------------------------------------------------------------------
def init_params(key, state_size, out_dim, hidden_size):
    ks = jax.random.split(key, 8)
    bound = 1.0 / float(hidden_size) ** 0.5

    def u(k, shape):
        w = jax.random.uniform(k, shape, jnp.float32, -bound, bound)
        # round matmul weights to bf16-representable values so the bf16-MXU
        # kernel and the f32 reference use identical weight values
        return w.astype(jnp.bfloat16).astype(jnp.float32)

    b_ih = jax.random.uniform(ks[2], (1, 4 * hidden_size), jnp.float32, -bound, bound)
    b_hh = jax.random.uniform(ks[3], (1, 4 * hidden_size), jnp.float32, -bound, bound)
    return dict(
        w_ih=u(ks[0], (state_size, 4 * hidden_size)),
        w_hh=u(ks[1], (hidden_size, 4 * hidden_size)),
        b_lstm=b_ih + b_hh,
        gamma=jnp.ones((1, hidden_size), jnp.float32),
        beta=jnp.zeros((1, hidden_size), jnp.float32),
        rmean=jnp.zeros((1, hidden_size), jnp.float32),
        rvar=jnp.ones((1, hidden_size), jnp.float32),
        w1=u(ks[4], (hidden_size, hidden_size)),
        b1=jax.random.uniform(ks[5], (1, hidden_size), jnp.float32, -bound, bound),
        w2=u(ks[6], (state_size // state_size * hidden_size, out_dim))[:hidden_size],
        b2=jax.random.uniform(ks[7], (1, out_dim), jnp.float32, -bound, bound),
    )


def pack_params(params, hidden_size):
    """Pad every gate slab / hidden axis to a 128-lane multiple, fold the 2x
    pre-scale of the tanh (g) gate into its weight/bias columns (so the kernel
    needs a single sigmoid pass), and cast the matmul weights to bf16.
    Padded lanes are constructed so the padded hidden state stays exactly 0."""
    H = hidden_size
    Hp = _round_up(H, 128)
    S = params["w_ih"].shape[0]
    out_dim = params["w2"].shape[1]

    def pad_gate_cols(w):                 # (in, 4H) -> (in, 4Hp), slab-aligned
        inn = w.shape[0]
        out = jnp.zeros((inn, 4 * Hp), jnp.float32)
        for k in range(4):
            out = out.at[:, k * Hp:k * Hp + H].set(w[:, k * H:(k + 1) * H])
        return out

    def pad_rows(w, rows_to):
        return jnp.pad(w, ((0, rows_to - w.shape[0]), (0, 0)))

    def pad_vec(v, fill):                 # (1, H) -> (1, Hp)
        return jnp.pad(v, ((0, 0), (0, Hp - H)), constant_values=fill)

    # 2x scale on the g slab: tanh(a) = 2*sigmoid(2a) - 1 (exact in bf16).
    gate_scale = jnp.concatenate(
        [jnp.full((Hp,), 2.0, jnp.float32) if k == 2
         else jnp.ones((Hp,), jnp.float32) for k in range(4)])[None, :]

    w_ih = (pad_gate_cols(params["w_ih"]) * gate_scale).astype(jnp.bfloat16)
    w_hh = (pad_rows(pad_gate_cols(params["w_hh"]), Hp)
            * gate_scale).astype(jnp.bfloat16)
    b = pad_gate_cols(params["b_lstm"]) * gate_scale

    w1 = pad_rows(jnp.pad(params["w1"], ((0, 0), (0, Hp - H))), Hp).astype(jnp.bfloat16)
    w2 = pad_rows(params["w2"], Hp).astype(jnp.bfloat16)

    return dict(
        w_ih=w_ih, w_hh=w_hh, b=b,
        gamma=pad_vec(params["gamma"], 0.0),
        beta=pad_vec(params["beta"], 0.0),
        rmean=pad_vec(params["rmean"], 0.0),
        rvar=pad_vec(params["rvar"], 1.0),
        w1=w1, b1=pad_vec(params["b1"], 0.0),
        w2=w2, b2=params["b2"],
        H=H, Hp=Hp, S=S, out_dim=out_dim)


# --------------------------------------------------------------------------
# pure-JAX reference (eval-mode semantics)
# --------------------------------------------------------------------------
def _reference_forward(state, hidden, params):
    h, c = hidden[0][0], hidden[1][0]
    H = h.shape[-1]
    for t in range(state.shape[1]):
        z = state[:, t, :] @ params["w_ih"] + h @ params["w_hh"] + params["b_lstm"]
        i_g = jax.nn.sigmoid(z[:, 0 * H:1 * H])
        f_g = jax.nn.sigmoid(z[:, 1 * H:2 * H])
        g_g = jnp.tanh(z[:, 2 * H:3 * H])
        o_g = jax.nn.sigmoid(z[:, 3 * H:4 * H])
        c = f_g * c + i_g * g_g
        h = o_g * jnp.tanh(c)

    def bn(y):
        return ((y - params["rmean"]) / jnp.sqrt(params["rvar"] + 1e-5)
                * params["gamma"] + params["beta"])

    y = bn(h)
    y = jnp.maximum(y @ params["w1"] + params["b1"], 0.0)
    y = bn(y)
    y = jnp.tanh(y @ params["w2"] + params["b2"])
    return y[:, None, :], (h[None], c[None])


if __name__ == "__main__":
    B, T, S, H, OUT = 2, 8, 16, 32, 4
    key = jax.random.PRNGKey(0)
    k_state, k_h0, k_c0, k_params = jax.random.split(key, 4)

    state = jax.random.normal(k_state, (B, T, S), jnp.float32)
    h0 = jax.random.normal(k_h0, (1, B, H), jnp.float32)
    c0 = jax.random.normal(k_c0, (1, B, H), jnp.float32)
    params = init_params(k_params, S, OUT, H)
    kparams = pack_params(params, H)

    action, (h_n, c_n) = jax.block_until_ready(
        lstm_critic_forward(state, (h0, c0), kparams))

    assert action.shape == (B, 1, OUT)
    assert h_n.shape == (1, B, H) and c_n.shape == (1, B, H)

    ref_action, (ref_h, ref_c) = _reference_forward(state, (h0, c0), params)
    # Kernel runs bf16 MXU matmuls (activations rounded to bf16, identical
    # weight values, f32 accumulation) -> compare at bf16-appropriate tolerance.
    assert jnp.allclose(action, ref_action, atol=2e-2, rtol=2e-2)
    assert jnp.allclose(h_n, ref_h, atol=2e-2, rtol=2e-2)
    assert jnp.allclose(c_n, ref_c, atol=2e-2, rtol=2e-2)

    print("KERNEL_OK")
</pallas_src>

<mosaic_0001>
module attributes {stable_mosaic.version = 11 : i64} {
  func.func @_critic_kernel(%arg0: i32, %arg1: memref<16x16xbf16, #tpu.memory_space<vmem>>, %arg2: memref<2x128xf32, #tpu.memory_space<vmem>>, %arg3: memref<2x128xf32, #tpu.memory_space<vmem>>, %arg4: memref<16x512xbf16, #tpu.memory_space<vmem>>, %arg5: memref<128x512xbf16, #tpu.memory_space<vmem>>, %arg6: memref<1x512xf32, #tpu.memory_space<vmem>>, %arg7: memref<1x128xf32, #tpu.memory_space<vmem>>, %arg8: memref<1x128xf32, #tpu.memory_space<vmem>>, %arg9: memref<1x128xf32, #tpu.memory_space<vmem>>, %arg10: memref<1x128xf32, #tpu.memory_space<vmem>>, %arg11: memref<128x128xbf16, #tpu.memory_space<vmem>>, %arg12: memref<1x128xf32, #tpu.memory_space<vmem>>, %arg13: memref<128x4xbf16, #tpu.memory_space<vmem>>, %arg14: memref<1x4xf32, #tpu.memory_space<vmem>>, %arg15: memref<2x4xf32, #tpu.memory_space<vmem>>, %arg16: memref<2x128xf32, #tpu.memory_space<vmem>>, %arg17: memref<2x128xf32, #tpu.memory_space<vmem>>, %arg18: memref<2x128xf32, #tpu.memory_space<vmem>>, %arg19: memref<2x128xf32, #tpu.memory_space<vmem>>) attributes {dimension_semantics = [#tpu.dimension_semantics<arbitrary>], iteration_bounds = array<i64: 1>, scalar_prefetch = 0 : i64, scratch_operands = 2 : i64, tpu.core_type = #tpu.core_type<tc>, window_params = [{transform_indices = @transform_0, window_bounds = array<i64: 16, 16>}, {pipeline_mode = #tpu.pipeline_mode<synchronous>, transform_indices = @transform_1, window_bounds = array<i64: 2, 128>}, {pipeline_mode = #tpu.pipeline_mode<synchronous>, transform_indices = @transform_2, window_bounds = array<i64: 2, 128>}, {pipeline_mode = #tpu.pipeline_mode<synchronous>, transform_indices = @transform_3, window_bounds = array<i64: 16, 512>}, {pipeline_mode = #tpu.pipeline_mode<synchronous>, transform_indices = @transform_4, window_bounds = array<i64: 128, 512>}, {pipeline_mode = #tpu.pipeline_mode<synchronous>, transform_indices = @transform_5, window_bounds = array<i64: 1, 512>}, {pipeline_mode = #tpu.pipeline_mode<synchronous>, transform_indices = @transform_6, window_bounds = array<i64: 1, 128>}, {pipeline_mode = #tpu.pipeline_mode<synchronous>, transform_indices = @transform_7, window_bounds = array<i64: 1, 128>}, {pipeline_mode = #tpu.pipeline_mode<synchronous>, transform_indices = @transform_8, window_bounds = array<i64: 1, 128>}, {pipeline_mode = #tpu.pipeline_mode<synchronous>, transform_indices = @transform_9, window_bounds = array<i64: 1, 128>}, {pipeline_mode = #tpu.pipeline_mode<synchronous>, transform_indices = @transform_10, window_bounds = array<i64: 128, 128>}, {pipeline_mode = #tpu.pipeline_mode<synchronous>, transform_indices = @transform_11, window_bounds = array<i64: 1, 128>}, {pipeline_mode = #tpu.pipeline_mode<synchronous>, transform_indices = @transform_12, window_bounds = array<i64: 128, 4>}, {pipeline_mode = #tpu.pipeline_mode<synchronous>, transform_indices = @transform_13, window_bounds = array<i64: 1, 4>}, {pipeline_mode = #tpu.pipeline_mode<synchronous>, transform_indices = @transform_14, window_bounds = array<i64: 2, 4>}, {pipeline_mode = #tpu.pipeline_mode<synchronous>, transform_indices = @transform_15, window_bounds = array<i64: 2, 128>}, {pipeline_mode = #tpu.pipeline_mode<synchronous>, transform_indices = @transform_16, window_bounds = array<i64: 2, 128>}]} {
    %c0_i32 = arith.constant 0 : i32
    %0 = arith.cmpi eq, %arg0, %c0_i32 : i32
    %1 = arith.extui %0 : i1 to i32
    %c0_i32_0 = arith.constant 0 : i32
    %2 = arith.cmpi ne, %1, %c0_i32_0 : i32
    scf.if %2 {
      %c0_50 = arith.constant 0 : index
      %c0_51 = arith.constant 0 : index
      %193 = vector.load %arg2[%c0_50, %c0_51] : memref<2x128xf32, #tpu.memory_space<vmem>>, vector<2x128xf32>
      %c0_52 = arith.constant 0 : index
      %c0_53 = arith.constant 0 : index
      %194 = vector.load %arg18[%c0_52, %c0_53] : memref<2x128xf32, #tpu.memory_space<vmem>>, vector<2x128xf32>
      tpu.vector_store %arg18[%c0_52, %c0_53], %193 {strides = array<i32>} : memref<2x128xf32, #tpu.memory_space<vmem>>, vector<2x128xf32>,
      %c0_54 = arith.constant 0 : index
      %c0_55 = arith.constant 0 : index
      %195 = vector.load %arg3[%c0_54, %c0_55] : memref<2x128xf32, #tpu.memory_space<vmem>>, vector<2x128xf32>
      %c0_56 = arith.constant 0 : index
      %c0_57 = arith.constant 0 : index
      %196 = vector.load %arg19[%c0_56, %c0_57] : memref<2x128xf32, #tpu.memory_space<vmem>>, vector<2x128xf32>
      tpu.vector_store %arg19[%c0_56, %c0_57], %195 {strides = array<i32>} : memref<2x128xf32, #tpu.memory_space<vmem>>, vector<2x128xf32>,
    } else {
    }
    %c0 = arith.constant 0 : index
    %c0_1 = arith.constant 0 : index
    %3 = vector.load %arg1[%c0, %c0_1] : memref<16x16xbf16, #tpu.memory_space<vmem>>, vector<16x16xbf16>
    %c0_2 = arith.constant 0 : index
    %c0_3 = arith.constant 0 : index
    %4 = vector.load %arg4[%c0_2, %c0_3] : memref<16x512xbf16, #tpu.memory_space<vmem>>, vector<16x512xbf16>
    %cst = arith.constant dense<0.000000e+00> : vector<16x512xf32>
    %5 = tpu.matmul %3, %4, %cst {dimension_numbers = #tpu.dot_dimension_numbers<[1], [0], [0], [1], [0, 0, 1, 1], [], []>} : vector<16x16xbf16>, vector<16x512xbf16>, vector<16x512xf32> -> vector<16x512xf32>
    %c0_4 = arith.constant 0 : index
    %c0_5 = arith.constant 0 : index
    %6 = vector.load %arg6[%c0_4, %c0_5] : memref<1x512xf32, #tpu.memory_space<vmem>>, vector<1x512xf32>
    %7 = vector.broadcast %6 : vector<1x512xf32> to vector<16x512xf32>
    %8 = arith.addf %5, %7 : vector<16x512xf32>
    %c0_6 = arith.constant 0 : index
    %c0_7 = arith.constant 0 : index
    %9 = vector.load %arg5[%c0_6, %c0_7] : memref<128x512xbf16, #tpu.memory_space<vmem>>, vector<128x512xbf16>
    %c0_8 = arith.constant 0 : index
    %c0_9 = arith.constant 0 : index
    %10 = vector.load %arg18[%c0_8, %c0_9] : memref<2x128xf32, #tpu.memory_space<vmem>>, vector<2x128xf32>
    %c0_10 = arith.constant 0 : index
    %c0_11 = arith.constant 0 : index
    %11 = vector.load %arg19[%c0_10, %c0_11] : memref<2x128xf32, #tpu.memory_space<vmem>>, vector<2x128xf32>
    %12 = vector.extract_strided_slice %8 {offsets = [0, 0], sizes = [2, 512], strides = [1, 1]} : vector<16x512xf32> to vector<2x512xf32>
    %13 = arith.truncf %10 : vector<2x128xf32> to vector<2x128xbf16>
    %cst_12 = arith.constant dense<0.000000e+00> : vector<2x512xf32>
    %14 = tpu.matmul %13, %9, %cst_12 {dimension_numbers = #tpu.dot_dimension_numbers<[1], [0], [0], [1], [0, 0, 1, 1], [], []>} : vector<2x128xbf16>, vector<128x512xbf16>, vector<2x512xf32> -> vector<2x512xf32>
    %15 = arith.addf %12, %14 : vector<2x512xf32>
    %16 = arith.negf %15 : vector<2x512xf32>
    %17 = math.exp %16 : vector<2x512xf32>
    %cst_13 = arith.constant 1.000000e+00 : f32
    %18 = vector.broadcast %cst_13 : f32 to vector<2x512xf32>
    %19 = arith.addf %18, %17 : vector<2x512xf32>
    %20 = arith.divf %18, %19 : vector<2x512xf32>
    %21 = vector.extract_strided_slice %20 {offsets = [0, 0], sizes = [2, 128], strides = [1, 1]} : vector<2x512xf32> to vector<2x128xf32>
    %22 = vector.extract_strided_slice %20 {offsets = [0, 128], sizes = [2, 128], strides = [1, 1]} : vector<2x512xf32> to vector<2x128xf32>
    %23 = vector.extract_strided_slice %20 {offsets = [0, 256], sizes = [2, 128], strides = [1, 1]} : vector<2x512xf32> to vector<2x128xf32>
    %cst_14 = arith.constant 2.000000e+00 : f32
    %24 = vector.broadcast %cst_14 : f32 to vector<2x128xf32>
    %25 = arith.mulf %24, %23 : vector<2x128xf32>
    %cst_15 = arith.constant 1.000000e+00 : f32
    %26 = vector.broadcast %cst_15 : f32 to vector<2x128xf32>
    %27 = arith.subf %25, %26 : vector<2x128xf32>
    %28 = vector.extract_strided_slice %20 {offsets = [0, 384], sizes = [2, 128], strides = [1, 1]} : vector<2x512xf32> to vector<2x128xf32>
    %29 = arith.mulf %22, %11 : vector<2x128xf32>
    %30 = arith.mulf %21, %27 : vector<2x128xf32>
    %31 = arith.addf %29, %30 : vector<2x128xf32>
    %32 = math.tanh %31 : vector<2x128xf32>
    %33 = arith.mulf %28, %32 : vector<2x128xf32>
    %34 = vector.extract_strided_slice %8 {offsets = [2, 0], sizes = [2, 512], strides = [1, 1]} : vector<16x512xf32> to vector<2x512xf32>
    %35 = arith.truncf %33 : vector<2x128xf32> to vector<2x128xbf16>
    %cst_16 = arith.constant dense<0.000000e+00> : vector<2x512xf32>
    %36 = tpu.matmul %35, %9, %cst_16 {dimension_numbers = #tpu.dot_dimension_numbers<[1], [0], [0], [1], [0, 0, 1, 1], [], []>} : vector<2x128xbf16>, vector<128x512xbf16>, vector<2x512xf32> -> vector<2x512xf32>
    %37 = arith.addf %34, %36 : vector<2x512xf32>
    %38 = arith.negf %37 : vector<2x512xf32>
    %39 = math.exp %38 : vector<2x512xf32>
    %cst_17 = arith.constant 1.000000e+00 : f32
    %40 = vector.broadcast %cst_17 : f32 to vector<2x512xf32>
    %41 = arith.addf %40, %39 : vector<2x512xf32>
    %42 = arith.divf %40, %41 : vector<2x512xf32>
    %43 = vector.extract_strided_slice %42 {offsets = [0, 0], sizes = [2, 128], strides = [1, 1]} : vector<2x512xf32> to vector<2x128xf32>
    %44 = vector.extract_strided_slice %42 {offsets = [0, 128], sizes = [2, 128], strides = [1, 1]} : vector<2x512xf32> to vector<2x128xf32>
    %45 = vector.extract_strided_slice %42 {offsets = [0, 256], sizes = [2, 128], strides = [1, 1]} : vector<2x512xf32> to vector<2x128xf32>
    %cst_18 = arith.constant 2.000000e+00 : f32
    %46 = vector.broadcast %cst_18 : f32 to vector<2x128xf32>
    %47 = arith.mulf %46, %45 : vector<2x128xf32>
    %cst_19 = arith.constant 1.000000e+00 : f32
    %48 = vector.broadcast %cst_19 : f32 to vector<2x128xf32>
    %49 = arith.subf %47, %48 : vector<2x128xf32>
    %50 = vector.extract_strided_slice %42 {offsets = [0, 384], sizes = [2, 128], strides = [1, 1]} : vector<2x512xf32> to vector<2x128xf32>
    %51 = arith.mulf %44, %31 : vector<2x128xf32>
    %52 = arith.mulf %43, %49 : vector<2x128xf32>
    %53 = arith.addf %51, %52 : vector<2x128xf32>
    %54 = math.tanh %53 : vector<2x128xf32>
    %55 = arith.mulf %50, %54 : vector<2x128xf32>
    %56 = vector.extract_strided_slice %8 {offsets = [4, 0], sizes = [2, 512], strides = [1, 1]} : vector<16x512xf32> to vector<2x512xf32>
    %57 = arith.truncf %55 : vector<2x128xf32> to vector<2x128xbf16>
    %cst_20 = arith.constant dense<0.000000e+00> : vector<2x512xf32>
    %58 = tpu.matmul %57, %9, %cst_20 {dimension_numbers = #tpu.dot_dimension_numbers<[1], [0], [0], [1], [0, 0, 1, 1], [], []>} : vector<2x128xbf16>, vector<128x512xbf16>, vector<2x512xf32> -> vector<2x512xf32>
    %59 = arith.addf %56, %58 : vector<2x512xf32>
    %60 = arith.negf %59 : vector<2x512xf32>
    %61 = math.exp %60 : vector<2x512xf32>
    %cst_21 = arith.constant 1.000000e+00 : f32
    %62 = vector.broadcast %cst_21 : f32 to vector<2x512xf32>
    %63 = arith.addf %62, %61 : vector<2x512xf32>
    %64 = arith.divf %62, %63 : vector<2x512xf32>
    %65 = vector.extract_strided_slice %64 {offsets = [0, 0], sizes = [2, 128], strides = [1, 1]} : vector<2x512xf32> to vector<2x128xf32>
    %66 = vector.extract_strided_slice %64 {offsets = [0, 128], sizes = [2, 128], strides = [1, 1]} : vector<2x512xf32> to vector<2x128xf32>
    %67 = vector.extract_strided_slice %64 {offsets = [0, 256], sizes = [2, 128], strides = [1, 1]} : vector<2x512xf32> to vector<2x128xf32>
    %cst_22 = arith.constant 2.000000e+00 : f32
    %68 = vector.broadcast %cst_22 : f32 to vector<2x128xf32>
    %69 = arith.mulf %68, %67 : vector<2x128xf32>
    %cst_23 = arith.constant 1.000000e+00 : f32
    %70 = vector.broadcast %cst_23 : f32 to vector<2x128xf32>
    %71 = arith.subf %69, %70 : vector<2x128xf32>
    %72 = vector.extract_strided_slice %64 {offsets = [0, 384], sizes = [2, 128], strides = [1, 1]} : vector<2x512xf32> to vector<2x128xf32>
    %73 = arith.mulf %66, %53 : vector<2x128xf32>
    %74 = arith.mulf %65, %71 : vector<2x128xf32>
    %75 = arith.addf %73, %74 : vector<2x128xf32>
    %76 = math.tanh %75 : vector<2x128xf32>
    %77 = arith.mulf %72, %76 : vector<2x128xf32>
    %78 = vector.extract_strided_slice %8 {offsets = [6, 0], sizes = [2, 512], strides = [1, 1]} : vector<16x512xf32> to vector<2x512xf32>
    %79 = arith.truncf %77 : vector<2x128xf32> to vector<2x128xbf16>
    %cst_24 = arith.constant dense<0.000000e+00> : vector<2x512xf32>
    %80 = tpu.matmul %79, %9, %cst_24 {dimension_numbers = #tpu.dot_dimension_numbers<[1], [0], [0], [1], [0, 0, 1, 1], [], []>} : vector<2x128xbf16>, vector<128x512xbf16>, vector<2x512xf32> -> vector<2x512xf32>
    %81 = arith.addf %78, %80 : vector<2x512xf32>
    %82 = arith.negf %81 : vector<2x512xf32>
    %83 = math.exp %82 : vector<2x512xf32>
    %cst_25 = arith.constant 1.000000e+00 : f32
    %84 = vector.broadcast %cst_25 : f32 to vector<2x512xf32>
    %85 = arith.addf %84, %83 : vector<2x512xf32>
    %86 = arith.divf %84, %85 : vector<2x512xf32>
    %87 = vector.extract_strided_slice %86 {offsets = [0, 0], sizes = [2, 128], strides = [1, 1]} : vector<2x512xf32> to vector<2x128xf32>
    %88 = vector.extract_strided_slice %86 {offsets = [0, 128], sizes = [2, 128], strides = [1, 1]} : vector<2x512xf32> to vector<2x128xf32>
    %89 = vector.extract_strided_slice %86 {offsets = [0, 256], sizes = [2, 128], strides = [1, 1]} : vector<2x512xf32> to vector<2x128xf32>
    %cst_26 = arith.constant 2.000000e+00 : f32
    %90 = vector.broadcast %cst_26 : f32 to vector<2x128xf32>
    %91 = arith.mulf %90, %89 : vector<2x128xf32>
    %cst_27 = arith.constant 1.000000e+00 : f32
    %92 = vector.broadcast %cst_27 : f32 to vector<2x128xf32>
    %93 = arith.subf %91, %92 : vector<2x128xf32>
    %94 = vector.extract_strided_slice %86 {offsets = [0, 384], sizes = [2, 128], strides = [1, 1]} : vector<2x512xf32> to vector<2x128xf32>
    %95 = arith.mulf %88, %75 : vector<2x128xf32>
    %96 = arith.mulf %87, %93 : vector<2x128xf32>
    %97 = arith.addf %95, %96 : vector<2x128xf32>
    %98 = math.tanh %97 : vector<2x128xf32>
    %99 = arith.mulf %94, %98 : vector<2x128xf32>
    %100 = vector.extract_strided_slice %8 {offsets = [8, 0], sizes = [2, 512], strides = [1, 1]} : vector<16x512xf32> to vector<2x512xf32>
    %101 = arith.truncf %99 : vector<2x128xf32> to vector<2x128xbf16>
    %cst_28 = arith.constant dense<0.000000e+00> : vector<2x512xf32>
    %102 = tpu.matmul %101, %9, %cst_28 {dimension_numbers = #tpu.dot_dimension_numbers<[1], [0], [0], [1], [0, 0, 1, 1], [], []>} : vector<2x128xbf16>, vector<128x512xbf16>, vector<2x512xf32> -> vector<2x512xf32>
    %103 = arith.addf %100, %102 : vector<2x512xf32>
    %104 = arith.negf %103 : vector<2x512xf32>
    %105 = math.exp %104 : vector<2x512xf32>
    %cst_29 = arith.constant 1.000000e+00 : f32
    %106 = vector.broadcast %cst_29 : f32 to vector<2x512xf32>
    %107 = arith.addf %106, %105 : vector<2x512xf32>
    %108 = arith.divf %106, %107 : vector<2x512xf32>
    %109 = vector.extract_strided_slice %108 {offsets = [0, 0], sizes = [2, 128], strides = [1, 1]} : vector<2x512xf32> to vector<2x128xf32>
    %110 = vector.extract_strided_slice %108 {offsets = [0, 128], sizes = [2, 128], strides = [1, 1]} : vector<2x512xf32> to vector<2x128xf32>
    %111 = vector.extract_strided_slice %108 {offsets = [0, 256], sizes = [2, 128], strides = [1, 1]} : vector<2x512xf32> to vector<2x128xf32>
    %cst_30 = arith.constant 2.000000e+00 : f32
    %112 = vector.broadcast %cst_30 : f32 to vector<2x128xf32>
    %113 = arith.mulf %112, %111 : vector<2x128xf32>
    %cst_31 = arith.constant 1.000000e+00 : f32
    %114 = vector.broadcast %cst_31 : f32 to vector<2x128xf32>
    %115 = arith.subf %113, %114 : vector<2x128xf32>
    %116 = vector.extract_strided_slice %108 {offsets = [0, 384], sizes = [2, 128], strides = [1, 1]} : vector<2x512xf32> to vector<2x128xf32>
    %117 = arith.mulf %110, %97 : vector<2x128xf32>
    %118 = arith.mulf %109, %115 : vector<2x128xf32>
    %119 = arith.addf %117, %118 : vector<2x128xf32>
    %120 = math.tanh %119 : vector<2x128xf32>
    %121 = arith.mulf %116, %120 : vector<2x128xf32>
    %122 = vector.extract_strided_slice %8 {offsets = [10, 0], sizes = [2, 512], strides = [1, 1]} : vector<16x512xf32> to vector<2x512xf32>
    %123 = arith.truncf %121 : vector<2x128xf32> to vector<2x128xbf16>
    %cst_32 = arith.constant dense<0.000000e+00> : vector<2x512xf32>
    %124 = tpu.matmul %123, %9, %cst_32 {dimension_numbers = #tpu.dot_dimension_numbers<[1], [0], [0], [1], [0, 0, 1, 1], [], []>} : vector<2x128xbf16>, vector<128x512xbf16>, vector<2x512xf32> -> vector<2x512xf32>
    %125 = arith.addf %122, %124 : vector<2x512xf32>
    %126 = arith.negf %125 : vector<2x512xf32>
    %127 = math.exp %126 : vector<2x512xf32>
    %cst_33 = arith.constant 1.000000e+00 : f32
    %128 = vector.broadcast %cst_33 : f32 to vector<2x512xf32>
    %129 = arith.addf %128, %127 : vector<2x512xf32>
    %130 = arith.divf %128, %129 : vector<2x512xf32>
    %131 = vector.extract_strided_slice %130 {offsets = [0, 0], sizes = [2, 128], strides = [1, 1]} : vector<2x512xf32> to vector<2x128xf32>
    %132 = vector.extract_strided_slice %130 {offsets = [0, 128], sizes = [2, 128], strides = [1, 1]} : vector<2x512xf32> to vector<2x128xf32>
    %133 = vector.extract_strided_slice %130 {offsets = [0, 256], sizes = [2, 128], strides = [1, 1]} : vector<2x512xf32> to vector<2x128xf32>
    %cst_34 = arith.constant 2.000000e+00 : f32
    %134 = vector.broadcast %cst_34 : f32 to vector<2x128xf32>
    %135 = arith.mulf %134, %133 : vector<2x128xf32>
    %cst_35 = arith.constant 1.000000e+00 : f32
    %136 = vector.broadcast %cst_35 : f32 to vector<2x128xf32>
    %137 = arith.subf %135, %136 : vector<2x128xf32>
    %138 = vector.extract_strided_slice %130 {offsets = [0, 384], sizes = [2, 128], strides = [1, 1]} : vector<2x512xf32> to vector<2x128xf32>
    %139 = arith.mulf %132, %119 : vector<2x128xf32>
    %140 = arith.mulf %131, %137 : vector<2x128xf32>
    %141 = arith.addf %139, %140 : vector<2x128xf32>
    %142 = math.tanh %141 : vector<2x128xf32>
    %143 = arith.mulf %138, %142 : vector<2x128xf32>
    %144 = vector.extract_strided_slice %8 {offsets = [12, 0], sizes = [2, 512], strides = [1, 1]} : vector<16x512xf32> to vector<2x512xf32>
    %145 = arith.truncf %143 : vector<2x128xf32> to vector<2x128xbf16>
    %cst_36 = arith.constant dense<0.000000e+00> : vector<2x512xf32>
    %146 = tpu.matmul %145, %9, %cst_36 {dimension_numbers = #tpu.dot_dimension_numbers<[1], [0], [0], [1], [0, 0, 1, 1], [], []>} : vector<2x128xbf16>, vector<128x512xbf16>, vector<2x512xf32> -> vector<2x512xf32>
    %147 = arith.addf %144, %146 : vector<2x512xf32>
    %148 = arith.negf %147 : vector<2x512xf32>
    %149 = math.exp %148 : vector<2x512xf32>
    %cst_37 = arith.constant 1.000000e+00 : f32
    %150 = vector.broadcast %cst_37 : f32 to vector<2x512xf32>
    %151 = arith.addf %150, %149 : vector<2x512xf32>
    %152 = arith.divf %150, %151 : vector<2x512xf32>
    %153 = vector.extract_strided_slice %152 {offsets = [0, 0], sizes = [2, 128], strides = [1, 1]} : vector<2x512xf32> to vector<2x128xf32>
    %154 = vector.extract_strided_slice %152 {offsets = [0, 128], sizes = [2, 128], strides = [1, 1]} : vector<2x512xf32> to vector<2x128xf32>
    %155 = vector.extract_strided_slice %152 {offsets = [0, 256], sizes = [2, 128], strides = [1, 1]} : vector<2x512xf32> to vector<2x128xf32>
    %cst_38 = arith.constant 2.000000e+00 : f32
    %156 = vector.broadcast %cst_38 : f32 to vector<2x128xf32>
    %157 = arith.mulf %156, %155 : vector<2x128xf32>
    %cst_39 = arith.constant 1.000000e+00 : f32
    %158 = vector.broadcast %cst_39 : f32 to vector<2x128xf32>
    %159 = arith.subf %157, %158 : vector<2x128xf32>
    %160 = vector.extract_strided_slice %152 {offsets = [0, 384], sizes = [2, 128], strides = [1, 1]} : vector<2x512xf32> to vector<2x128xf32>
    %161 = arith.mulf %154, %141 : vector<2x128xf32>
    %162 = arith.mulf %153, %159 : vector<2x128xf32>
    %163 = arith.addf %161, %162 : vector<2x128xf32>
    %164 = math.tanh %163 : vector<2x128xf32>
    %165 = arith.mulf %160, %164 : vector<2x128xf32>
    %166 = vector.extract_strided_slice %8 {offsets = [14, 0], sizes = [2, 512], strides = [1, 1]} : vector<16x512xf32> to vector<2x512xf32>
    %167 = arith.truncf %165 : vector<2x128xf32> to vector<2x128xbf16>
    %cst_40 = arith.constant dense<0.000000e+00> : vector<2x512xf32>
    %168 = tpu.matmul %167, %9, %cst_40 {dimension_numbers = #tpu.dot_dimension_numbers<[1], [0], [0], [1], [0, 0, 1, 1], [], []>} : vector<2x128xbf16>, vector<128x512xbf16>, vector<2x512xf32> -> vector<2x512xf32>
    %169 = arith.addf %166, %168 : vector<2x512xf32>
    %170 = arith.negf %169 : vector<2x512xf32>
    %171 = math.exp %170 : vector<2x512xf32>
    %cst_41 = arith.constant 1.000000e+00 : f32
    %172 = vector.broadcast %cst_41 : f32 to vector<2x512xf32>
    %173 = arith.addf %172, %171 : vector<2x512xf32>
    %174 = arith.divf %172, %173 : vector<2x512xf32>
    %175 = vector.extract_strided_slice %174 {offsets = [0, 0], sizes = [2, 128], strides = [1, 1]} : vector<2x512xf32> to vector<2x128xf32>
    %176 = vector.extract_strided_slice %174 {offsets = [0, 128], sizes = [2, 128], strides = [1, 1]} : vector<2x512xf32> to vector<2x128xf32>
    %177 = vector.extract_strided_slice %174 {offsets = [0, 256], sizes = [2, 128], strides = [1, 1]} : vector<2x512xf32> to vector<2x128xf32>
    %cst_42 = arith.constant 2.000000e+00 : f32
    %178 = vector.broadcast %cst_42 : f32 to vector<2x128xf32>
    %179 = arith.mulf %178, %177 : vector<2x128xf32>
    %cst_43 = arith.constant 1.000000e+00 : f32
    %180 = vector.broadcast %cst_43 : f32 to vector<2x128xf32>
    %181 = arith.subf %179, %180 : vector<2x128xf32>
    %182 = vector.extract_strided_slice %174 {offsets = [0, 384], sizes = [2, 128], strides = [1, 1]} : vector<2x512xf32> to vector<2x128xf32>
    %183 = arith.mulf %176, %163 : vector<2x128xf32>
    %184 = arith.mulf %175, %181 : vector<2x128xf32>
    %185 = arith.addf %183, %184 : vector<2x128xf32>
    %186 = math.tanh %185 : vector<2x128xf32>
    %187 = arith.mulf %182, %186 : vector<2x128xf32>
    %c0_44 = arith.constant 0 : index
    %c0_45 = arith.constant 0 : index
    %188 = vector.load %arg18[%c0_44, %c0_45] : memref<2x128xf32, #tpu.memory_space<vmem>>, vector<2x128xf32>
    tpu.vector_store %arg18[%c0_44, %c0_45], %187 {strides = array<i32>} : memref<2x128xf32, #tpu.memory_space<vmem>>, vector<2x128xf32>,
    %c0_46 = arith.constant 0 : index
    %c0_47 = arith.constant 0 : index
    %189 = vector.load %arg19[%c0_46, %c0_47] : memref<2x128xf32, #tpu.memory_space<vmem>>, vector<2x128xf32>
    tpu.vector_store %arg19[%c0_46, %c0_47], %185 {strides = array<i32>} : memref<2x128xf32, #tpu.memory_space<vmem>>, vector<2x128xf32>,
    %c0_i32_48 = arith.constant 0 : i32
    %190 = arith.cmpi eq, %arg0, %c0_i32_48 : i32
    %191 = arith.extui %190 : i1 to i32
    %c0_i32_49 = arith.constant 0 : i32
    %192 = arith.cmpi ne, %191, %c0_i32_49 : i32
    scf.if %192 {
      %c0_50 = arith.constant 0 : index
      %c0_51 = arith.constant 0 : index
      %193 = vector.load %arg16[%c0_50, %c0_51] : memref<2x128xf32, #tpu.memory_space<vmem>>, vector<2x128xf32>
      tpu.vector_store %arg16[%c0_50, %c0_51], %187 {strides = array<i32>} : memref<2x128xf32, #tpu.memory_space<vmem>>, vector<2x128xf32>,
      %c0_52 = arith.constant 0 : index
      %c0_53 = arith.constant 0 : index
      %194 = vector.load %arg17[%c0_52, %c0_53] : memref<2x128xf32, #tpu.memory_space<vmem>>, vector<2x128xf32>
      tpu.vector_store %arg17[%c0_52, %c0_53], %185 {strides = array<i32>} : memref<2x128xf32, #tpu.memory_space<vmem>>, vector<2x128xf32>,
      %c0_54 = arith.constant 0 : index
      %c0_55 = arith.constant 0 : index
      %195 = vector.load %arg10[%c0_54, %c0_55] : memref<1x128xf32, #tpu.memory_space<vmem>>, vector<1x128xf32>
      %cst_56 = arith.constant 9.99999974E-6 : f32
      %196 = vector.broadcast %cst_56 : f32 to vector<1x128xf32>
      %197 = arith.addf %195, %196 : vector<1x128xf32>
      %198 = math.rsqrt %197 : vector<1x128xf32>
      %c0_57 = arith.constant 0 : index
      %c0_58 = arith.constant 0 : index
      %199 = vector.load %arg9[%c0_57, %c0_58] : memref<1x128xf32, #tpu.memory_space<vmem>>, vector<1x128xf32>
      %200 = vector.broadcast %199 : vector<1x128xf32> to vector<2x128xf32>
      %201 = arith.subf %187, %200 : vector<2x128xf32>
      %202 = vector.broadcast %198 : vector<1x128xf32> to vector<2x128xf32>
      %203 = arith.mulf %201, %202 : vector<2x128xf32>
      %c0_59 = arith.constant 0 : index
      %c0_60 = arith.constant 0 : index
      %204 = vector.load %arg7[%c0_59, %c0_60] : memref<1x128xf32, #tpu.memory_space<vmem>>, vector<1x128xf32>
      %205 = vector.broadcast %204 : vector<1x128xf32> to vector<2x128xf32>
      %206 = arith.mulf %203, %205 : vector<2x128xf32>
      %c0_61 = arith.constant 0 : index
      %c0_62 = arith.constant 0 : index
      %207 = vector.load %arg8[%c0_61, %c0_62] : memref<1x128xf32, #tpu.memory_space<vmem>>, vector<1x128xf32>
      %208 = vector.broadcast %207 : vector<1x128xf32> to vector<2x128xf32>
      %209 = arith.addf %206, %208 : vector<2x128xf32>
      %210 = arith.truncf %209 : vector<2x128xf32> to vector<2x128xbf16>
      %c0_63 = arith.constant 0 : index
      %c0_64 = arith.constant 0 : index
      %211 = vector.load %arg11[%c0_63, %c0_64] : memref<128x128xbf16, #tpu.memory_space<vmem>>, vector<128x128xbf16>
      %cst_65 = arith.constant dense<0.000000e+00> : vector<2x128xf32>
      %212 = tpu.matmul %210, %211, %cst_65 {dimension_numbers = #tpu.dot_dimension_numbers<[1], [0], [0], [1], [0, 0, 1, 1], [], []>} : vector<2x128xbf16>, vector<128x128xbf16>, vector<2x128xf32> -> vector<2x128xf32>
      %c0_66 = arith.constant 0 : index
      %c0_67 = arith.constant 0 : index
      %213 = vector.load %arg12[%c0_66, %c0_67] : memref<1x128xf32, #tpu.memory_space<vmem>>, vector<1x128xf32>
      %214 = vector.broadcast %213 : vector<1x128xf32> to vector<2x128xf32>
      %215 = arith.addf %212, %214 : vector<2x128xf32>
      %cst_68 = arith.constant 0.000000e+00 : f32
      %216 = vector.broadcast %cst_68 : f32 to vector<2x128xf32>
      %217 = arith.maximumf %215, %216 : vector<2x128xf32>
      %c0_69 = arith.constant 0 : index
      %c0_70 = arith.constant 0 : index
      %218 = vector.load %arg9[%c0_69, %c0_70] : memref<1x128xf32, #tpu.memory_space<vmem>>, vector<1x128xf32>
      %219 = vector.broadcast %218 : vector<1x128xf32> to vector<2x128xf32>
      %220 = arith.subf %217, %219 : vector<2x128xf32>
      %221 = vector.broadcast %198 : vector<1x128xf32> to vector<2x128xf32>
      %222 = arith.mulf %220, %221 : vector<2x128xf32>
      %c0_71 = arith.constant 0 : index
      %c0_72 = arith.constant 0 : index
      %223 = vector.load %arg7[%c0_71, %c0_72] : memref<1x128xf32, #tpu.memory_space<vmem>>, vector<1x128xf32>
      %224 = vector.broadcast %223 : vector<1x128xf32> to vector<2x128xf32>
      %225 = arith.mulf %222, %224 : vector<2x128xf32>
      %c0_73 = arith.constant 0 : index
      %c0_74 = arith.constant 0 : index
      %226 = vector.load %arg8[%c0_73, %c0_74] : memref<1x128xf32, #tpu.memory_space<vmem>>, vector<1x128xf32>
      %227 = vector.broadcast %226 : vector<1x128xf32> to vector<2x128xf32>
      %228 = arith.addf %225, %227 : vector<2x128xf32>
      %229 = arith.truncf %228 : vector<2x128xf32> to vector<2x128xbf16>
      %c0_75 = arith.constant 0 : index
      %c0_76 = arith.constant 0 : index
      %230 = vector.load %arg13[%c0_75, %c0_76] : memref<128x4xbf16, #tpu.memory_space<vmem>>, vector<128x4xbf16>
      %cst_77 = arith.constant dense<0.000000e+00> : vector<2x4xf32>
      %231 = tpu.matmul %229, %230, %cst_77 {dimension_numbers = #tpu.dot_dimension_numbers<[1], [0], [0], [1], [0, 0, 1, 1], [], []>} : vector<2x128xbf16>, vector<128x4xbf16>, vector<2x4xf32> -> vector<2x4xf32>
      %c0_78 = arith.constant 0 : index
      %c0_79 = arith.constant 0 : index
      %232 = vector.load %arg14[%c0_78, %c0_79] : memref<1x4xf32, #tpu.memory_space<vmem>>, vector<1x4xf32>
      %233 = vector.broadcast %232 : vector<1x4xf32> to vector<2x4xf32>
      %234 = arith.addf %231, %233 : vector<2x4xf32>
      %235 = math.tanh %234 : vector<2x4xf32>
      %c0_80 = arith.constant 0 : index
      %c0_81 = arith.constant 0 : index
      %236 = vector.load %arg15[%c0_80, %c0_81] : memref<2x4xf32, #tpu.memory_space<vmem>>, vector<2x4xf32>
      tpu.vector_store %arg15[%c0_80, %c0_81], %235 {strides = array<i32>} : memref<2x4xf32, #tpu.memory_space<vmem>>, vector<2x4xf32>,
    } else {
    }
    return
  }
  func.func @transform_0(%arg0: i32) -> (i32, i32) {
    %c0_i32 = arith.constant 0 : i32
    %c0_i32_0 = arith.constant 0 : i32
    return %arg0, %c0_i32 : i32, i32
  }
  func.func @transform_1(%arg0: i32) -> (i32, i32) {
    %c0_i32 = arith.constant 0 : i32
    %c0_i32_0 = arith.constant 0 : i32
    %c0_i32_1 = arith.constant 0 : i32
    return %c0_i32, %c0_i32_0 : i32, i32
  }
  func.func @transform_2(%arg0: i32) -> (i32, i32) {
    %c0_i32 = arith.constant 0 : i32
    %c0_i32_0 = arith.constant 0 : i32
    %c0_i32_1 = arith.constant 0 : i32
    return %c0_i32, %c0_i32_0 : i32, i32
  }
  func.func @transform_3(%arg0: i32) -> (i32, i32) {
    %c0_i32 = arith.constant 0 : i32
    %c0_i32_0 = arith.constant 0 : i32
    %c0_i32_1 = arith.constant 0 : i32
    return %c0_i32, %c0_i32_0 : i32, i32
  }
  func.func @transform_4(%arg0: i32) -> (i32, i32) {
    %c0_i32 = arith.constant 0 : i32
    %c0_i32_0 = arith.constant 0 : i32
    %c0_i32_1 = arith.constant 0 : i32
    return %c0_i32, %c0_i32_0 : i32, i32
  }
  func.func @transform_5(%arg0: i32) -> (i32, i32) {
    %c0_i32 = arith.constant 0 : i32
    %c0_i32_0 = arith.constant 0 : i32
    %c0_i32_1 = arith.constant 0 : i32
    return %c0_i32, %c0_i32_0 : i32, i32
  }
  func.func @transform_6(%arg0: i32) -> (i32, i32) {
    %c0_i32 = arith.constant 0 : i32
    %c0_i32_0 = arith.constant 0 : i32
    %c0_i32_1 = arith.constant 0 : i32
    return %c0_i32, %c0_i32_0 : i32, i32
  }
  func.func @transform_7(%arg0: i32) -> (i32, i32) {
    %c0_i32 = arith.constant 0 : i32
    %c0_i32_0 = arith.constant 0 : i32
    %c0_i32_1 = arith.constant 0 : i32
    return %c0_i32, %c0_i32_0 : i32, i32
  }
  func.func @transform_8(%arg0: i32) -> (i32, i32) {
    %c0_i32 = arith.constant 0 : i32
    %c0_i32_0 = arith.constant 0 : i32
    %c0_i32_1 = arith.constant 0 : i32
    return %c0_i32, %c0_i32_0 : i32, i32
  }
  func.func @transform_9(%arg0: i32) -> (i32, i32) {
    %c0_i32 = arith.constant 0 : i32
    %c0_i32_0 = arith.constant 0 : i32
    %c0_i32_1 = arith.constant 0 : i32
    return %c0_i32, %c0_i32_0 : i32, i32
  }
  func.func @transform_10(%arg0: i32) -> (i32, i32) {
    %c0_i32 = arith.constant 0 : i32
    %c0_i32_0 = arith.constant 0 : i32
    %c0_i32_1 = arith.constant 0 : i32
    return %c0_i32, %c0_i32_0 : i32, i32
  }
  func.func @transform_11(%arg0: i32) -> (i32, i32) {
    %c0_i32 = arith.constant 0 : i32
    %c0_i32_0 = arith.constant 0 : i32
    %c0_i32_1 = arith.constant 0 : i32
    return %c0_i32, %c0_i32_0 : i32, i32
  }
  func.func @transform_12(%arg0: i32) -> (i32, i32) {
    %c0_i32 = arith.constant 0 : i32
    %c0_i32_0 = arith.constant 0 : i32
    %c0_i32_1 = arith.constant 0 : i32
    return %c0_i32, %c0_i32_0 : i32, i32
  }
  func.func @transform_13(%arg0: i32) -> (i32, i32) {
    %c0_i32 = arith.constant 0 : i32
    %c0_i32_0 = arith.constant 0 : i32
    %c0_i32_1 = arith.constant 0 : i32
    return %c0_i32, %c0_i32_0 : i32, i32
  }
  func.func @transform_14(%arg0: i32) -> (i32, i32) {
    %c0_i32 = arith.constant 0 : i32
    %c0_i32_0 = arith.constant 0 : i32
    %c0_i32_1 = arith.constant 0 : i32
    return %c0_i32, %c0_i32_0 : i32, i32
  }
  func.func @transform_15(%arg0: i32) -> (i32, i32) {
    %c0_i32 = arith.constant 0 : i32
    %c0_i32_0 = arith.constant 0 : i32
    %c0_i32_1 = arith.constant 0 : i32
    return %c0_i32, %c0_i32_0 : i32, i32
  }
  func.func @transform_16(%arg0: i32) -> (i32, i32) {
    %c0_i32 = arith.constant 0 : i32
    %c0_i32_0 = arith.constant 0 : i32
    %c0_i32_1 = arith.constant 0 : i32
    return %c0_i32, %c0_i32_0 : i32, i32
  }
}

</mosaic_0001>

<llo_original>
// kernel: tpu_custom_call.1
$region0: #{tpu_custom_call.1}
  #allocation0 [shape = 'u32[]', space=smem, size = 0x4, offset = 0x4, fixed_abs, tag = 'smem constant byte address 0x4 - core index']
  #allocation1 [shape = 'u32[144,128]{1,0:T(1,128)}', space=vmem, size = 0x12000, scoped, tag = 'internal scratch']
  #allocation2 [shape = 'f32[2,128]{1,0:T(2,128)}', space=vmem, size = 0x400, scoped, tag = 'scratch operand']
  #allocation3 [shape = 'f32[2,128]{1,0:T(2,128)}', space=vmem, size = 0x400, scoped, tag = 'scratch operand']
  %s0 = inlined_call_operand.vmem [shape: bf16[16,16], index: 0, kind: input, shape index: {}]
  %s1 = inlined_call_operand.hbm [shape: f32[2,128], index: 1, kind: input, shape index: {}, may-alias: {1,15}]
  %s2 = inlined_call_operand.hbm [shape: f32[2,128], index: 2, kind: input, shape index: {}, may-alias: {2,16}]
  %s3 = inlined_call_operand.hbm [shape: bf16[16,512], index: 3, kind: input, shape index: {}]
  %s4 = inlined_call_operand.hbm [shape: bf16[128,512], index: 4, kind: input, shape index: {}]
  %s5 = inlined_call_operand.vmem [shape: f32[1,512], index: 5, kind: input, shape index: {}]
  %s6 = inlined_call_operand.vmem [shape: f32[1,128], index: 6, kind: input, shape index: {}]
  %s7 = inlined_call_operand.vmem [shape: f32[1,128], index: 7, kind: input, shape index: {}]
  %s8 = inlined_call_operand.vmem [shape: f32[1,128], index: 8, kind: input, shape index: {}]
  %s9 = inlined_call_operand.hbm [shape: f32[1,128], index: 9, kind: input, shape index: {}]
  %s10 = inlined_call_operand.vmem [shape: bf16[128,128], index: 10, kind: input, shape index: {}]
  %s11 = inlined_call_operand.hbm [shape: f32[1,128], index: 11, kind: input, shape index: {}]
  %s12 = inlined_call_operand.vmem [shape: bf16[128,4], index: 12, kind: input, shape index: {}]
  %s13 = inlined_call_operand.hbm [shape: f32[1,4], index: 13, kind: input, shape index: {}]
  %s14 = inlined_call_operand.hbm [shape: f32[2,4], index: 14, kind: output, shape index: {0}]
  %s15 = inlined_call_operand.hbm [shape: f32[2,128], index: 15, kind: output, shape index: {1}, may-alias: {1,15}]
  %s16 = inlined_call_operand.hbm [shape: f32[2,128], index: 16, kind: output, shape index: {2}, may-alias: {2,16}]
  %17 = xla_tuple %s14, %s15, %s16
  %s18 = sld [smem:[#allocation0]]
  $region118: #{tpu_custom_call.1} parent=0
    _
  %s20 = ssub.s32 1, %s18
  %s21 = scalar_select 0, %s20, %s18
  $region1: #{tpu_custom_call.1} parent=0
    #allocation4 [shape = 'u8[1024]{0}', space=vmem, size = 0x400, scoped, tag = 'input window, operand 1, single buffered']
    #allocation5 [shape = 's32[1]{0}', space=sflag, size = 0x4, scoped, tag = 'scoped memory for tpu_custom_call.1']
    #allocation6 [shape = 's32[1]{0}', space=sflag, size = 0x4, scoped, tag = 'scoped memory for tpu_custom_call.1']
    #allocation7 [shape = 'u8[1024]{0}', space=vmem, size = 0x400, scoped, tag = 'input window, operand 2, single buffered']
    #allocation8 [shape = 's32[1]{0}', space=sflag, size = 0x4, scoped, tag = 'scoped memory for tpu_custom_call.1']
    #allocation9 [shape = 'u8[16384]{0}', space=vmem, size = 0x4000, scoped, tag = 'input window, operand 3, single buffered']
    #allocation10 [shape = 'u8[131072]{0}', space=vmem, size = 0x20000, scoped, tag = 'input window, operand 4, single buffered']
    #allocation11 [shape = 's32[1]{0}', space=sflag, size = 0x4, scoped, tag = 'scoped memory for tpu_custom_call.1']
    #allocation12 [shape = 'u8[512]{0}', space=vmem, size = 0x400, scoped, tag = 'input window, operand 9, single buffered']
    #allocation13 [shape = 'u8[512]{0}', space=vmem, size = 0x400, scoped, tag = 'input window, operand 11, single buffered']
    #allocation14 [shape = 's32[1]{0}', space=sflag, size = 0x4, scoped, tag = 'scoped memory for tpu_custom_call.1']
    #allocation15 [shape = 'u8[512]{0}', space=vmem, size = 0x400, scoped, tag = 'input window, operand 13, single buffered']
    #allocation16 [shape = 'u8[1024]{0}', space=vmem, size = 0x400, scoped, tag = 'output window, operand 0, single buffered']
    #allocation17 [shape = 'u8[1024]{0}', space=vmem, size = 0x400, scoped, tag = 'output window, operand 1, single buffered']
    #allocation18 [shape = 's32[1]{0}', space=sflag, size = 0x4, scoped, tag = 'scoped memory for tpu_custom_call.1']
    #allocation19 [shape = 'u8[1024]{0}', space=vmem, size = 0x400, scoped, tag = 'output window, operand 2, single buffered']
    %22 = vsyncpa [#allocation5], 0
    %23 = vsyncpa [#allocation8], 0
    %24 = vsyncpa [#allocation11], 0
    %25 = vsyncpa [#allocation14], 0
    %26 = vsyncpa [#allocation6], 0
    %27 = vsyncpa [#allocation18], 0
    // Predicated region
    $region2: #{tpu_custom_call.1} parent=1 // pred_check
      _
    $region3: #{tpu_custom_call.1} parent=1 // pred_check_branch
      %29 = sbr.rel (0) target = $region5
    $region4: #{tpu_custom_call.1} parent=1 // pred_region
      _
    $region5: #{tpu_custom_call.1} parent=1 // pred_fallthru
      _
    // Predicated region
    $region6: #{tpu_custom_call.1} parent=1 // pred_check
      _
    $region7: #{tpu_custom_call.1} parent=1 // pred_check_branch
      %31 = sbr.rel (0) target = $region9
    $region8: #{tpu_custom_call.1} parent=1 // pred_region
      %s33 = ssub.s32 32, 32
      %34 = vsyncadd [#allocation5], %s33
      %s36 = sshll.u32 [#allocation4], 4
      %s37 = int_to_ptr.vmem [resolvable:$true] %s36
      %39 = dma.hbm_to_vmem [thread:$0]  %s1, 32, %s37, [#allocation5]
    $region9: #{tpu_custom_call.1} parent=1 // pred_fallthru
      _
    // Predicated region
    $region10: #{tpu_custom_call.1} parent=1 // pred_check
      _
    $region11: #{tpu_custom_call.1} parent=1 // pred_check_branch
      %41 = sbr.rel (0) target = $region13
    $region12: #{tpu_custom_call.1} parent=1 // pred_region
      %s43 = ssub.s32 32, 32
      %44 = vsyncadd [#allocation8], %s43
      %s46 = sshll.u32 [#allocation7], 4
      %s47 = int_to_ptr.vmem [resolvable:$true] %s46
      %49 = dma.hbm_to_vmem [thread:$0]  %s2, 32, %s47, [#allocation8]
    $region13: #{tpu_custom_call.1} parent=1 // pred_fallthru
      _
    // Predicated region
    $region14: #{tpu_custom_call.1} parent=1 // pred_check
      _
    $region15: #{tpu_custom_call.1} parent=1 // pred_check_branch
      %51 = sbr.rel (0) target = $region17
    $region16: #{tpu_custom_call.1} parent=1 // pred_region
      %s53 = ssub.s32 512, 512
      %54 = vsyncadd [#allocation8], %s53
      %s55 = sshll.u32 [#allocation9], 4
      %s56 = int_to_ptr.vmem [resolvable:$true] %s55
      %61 = dma.hbm_to_vmem [thread:$0]  %s3, 512, %s56, [#allocation8], 256, 256, 16
    $region17: #{tpu_custom_call.1} parent=1 // pred_fallthru
      _
    // Predicated region
    $region18: #{tpu_custom_call.1} parent=1 // pred_check
      _
    $region19: #{tpu_custom_call.1} parent=1 // pred_check_branch
      %63 = sbr.rel (0) target = $region21
    $region20: #{tpu_custom_call.1} parent=1 // pred_region
      %s65 = ssub.s32 4096, 4096
      %66 = vsyncadd [#allocation11], %s65
      %s67 = sshll.u32 [#allocation10], 4
      %s68 = int_to_ptr.vmem [resolvable:$true] %s67
      %73 = dma.hbm_to_vmem [thread:$0]  %s4, 4096, %s68, [#allocation11], 256, 256, 16
    $region21: #{tpu_custom_call.1} parent=1 // pred_fallthru
      _
    // Predicated region
    $region22: #{tpu_custom_call.1} parent=1 // pred_check
      _
    $region23: #{tpu_custom_call.1} parent=1 // pred_check_branch
      %75 = sbr.rel (0) target = $region25
    $region24: #{tpu_custom_call.1} parent=1 // pred_region
      _
    $region25: #{tpu_custom_call.1} parent=1 // pred_fallthru
      _
    // Predicated region
    $region26: #{tpu_custom_call.1} parent=1 // pred_check
      _
    $region27: #{tpu_custom_call.1} parent=1 // pred_check_branch
      %77 = sbr.rel (0) target = $region29
    $region28: #{tpu_custom_call.1} parent=1 // pred_region
      _
    $region29: #{tpu_custom_call.1} parent=1 // pred_fallthru
      _
    // Predicated region
    $region30: #{tpu_custom_call.1} parent=1 // pred_check
      _
    $region31: #{tpu_custom_call.1} parent=1 // pred_check_branch
      %79 = sbr.rel (0) target = $region33
    $region32: #{tpu_custom_call.1} parent=1 // pred_region
      _
    $region33: #{tpu_custom_call.1} parent=1 // pred_fallthru
      _
    // Predicated region
    $region34: #{tpu_custom_call.1} parent=1 // pred_check
      _
    $region35: #{tpu_custom_call.1} parent=1 // pred_check_branch
      %81 = sbr.rel (0) target = $region37
    $region36: #{tpu_custom_call.1} parent=1 // pred_region
      _
    $region37: #{tpu_custom_call.1} parent=1 // pred_fallthru
      _
    // Predicated region
    $region38: #{tpu_custom_call.1} parent=1 // pred_check
      _
    $region39: #{tpu_custom_call.1} parent=1 // pred_check_branch
      %83 = sbr.rel (0) target = $region41
    $region40: #{tpu_custom_call.1} parent=1 // pred_region
      %s85 = ssub.s32 16, 16
      %86 = vsyncadd [#allocation11], %s85
      %s88 = sshll.u32 [#allocation12], 4
      %s89 = int_to_ptr.vmem [resolvable:$true] %s88
      %91 = dma.hbm_to_vmem [thread:$0]  %s9, 16, %s89, [#allocation11]
    $region41: #{tpu_custom_call.1} parent=1 // pred_fallthru
      _
    // Predicated region
    $region42: #{tpu_custom_call.1} parent=1 // pred_check
      _
    $region43: #{tpu_custom_call.1} parent=1 // pred_check_branch
      %93 = sbr.rel (0) target = $region45
    $region44: #{tpu_custom_call.1} parent=1 // pred_region
      _
    $region45: #{tpu_custom_call.1} parent=1 // pred_fallthru
      _
    // Predicated region
    $region46: #{tpu_custom_call.1} parent=1 // pred_check
      _
    $region47: #{tpu_custom_call.1} parent=1 // pred_check_branch
      %95 = sbr.rel (0) target = $region49
    $region48: #{tpu_custom_call.1} parent=1 // pred_region
      %s97 = ssub.s32 16, 16
      %98 = vsyncadd [#allocation14], %s97
      %s100 = sshll.u32 [#allocation13], 4
      %s101 = int_to_ptr.vmem [resolvable:$true] %s100
      %103 = dma.hbm_to_vmem [thread:$0]  %s11, 16, %s101, [#allocation14]
    $region49: #{tpu_custom_call.1} parent=1 // pred_fallthru
      _
    // Predicated region
    $region50: #{tpu_custom_call.1} parent=1 // pred_check
      _
    $region51: #{tpu_custom_call.1} parent=1 // pred_check_branch
      %105 = sbr.rel (0) target = $region53
    $region52: #{tpu_custom_call.1} parent=1 // pred_region
      _
    $region53: #{tpu_custom_call.1} parent=1 // pred_fallthru
      _
    // Predicated region
    $region54: #{tpu_custom_call.1} parent=1 // pred_check
      _
    $region55: #{tpu_custom_call.1} parent=1 // pred_check_branch
      %107 = sbr.rel (0) target = $region57
    $region56: #{tpu_custom_call.1} parent=1 // pred_region
      %s109 = ssub.s32 16, 16
      %110 = vsyncadd [#allocation14], %s109
      %s112 = sshll.u32 [#allocation15], 4
      %s113 = int_to_ptr.vmem [resolvable:$true] %s112
      %115 = dma.hbm_to_vmem [thread:$0]  %s13, 16, %s113, [#allocation14]
    $region57: #{tpu_custom_call.1} parent=1 // pred_fallthru
      _
    // Predicated region
    $region58: #{tpu_custom_call.1} parent=1 // pred_check
      _
    $region59: #{tpu_custom_call.1} parent=1 // pred_check_branch
      %117 = sbr.rel (0) target = $region61
    $region60: #{tpu_custom_call.1} parent=1 // pred_region
      %118 = dma.done [#allocation5], 32
    $region61: #{tpu_custom_call.1} parent=1 // pred_fallthru
      _
    // Predicated region
    $region62: #{tpu_custom_call.1} parent=1 // pred_check
      _
    $region63: #{tpu_custom_call.1} parent=1 // pred_check_branch
      %120 = sbr.rel (0) target = $region65
    $region64: #{tpu_custom_call.1} parent=1 // pred_region
      %121 = dma.done [#allocation8], 32
    $region65: #{tpu_custom_call.1} parent=1 // pred_fallthru
      _
    // Predicated region
    $region66: #{tpu_custom_call.1} parent=1 // pred_check
      _
    $region67: #{tpu_custom_call.1} parent=1 // pred_check_branch
      %123 = sbr.rel (0) target = $region69
    $region68: #{tpu_custom_call.1} parent=1 // pred_region
      %124 = dma.done [#allocation8], 512
    $region69: #{tpu_custom_call.1} parent=1 // pred_fallthru
      _
    // Predicated region
    $region70: #{tpu_custom_call.1} parent=1 // pred_check
      _
    $region71: #{tpu_custom_call.1} parent=1 // pred_check_branch
      %126 = sbr.rel (0) target = $region73
    $region72: #{tpu_custom_call.1} parent=1 // pred_region
      %127 = dma.done [#allocation11], 4096
    $region73: #{tpu_custom_call.1} parent=1 // pred_fallthru
      _
    // Predicated region
    $region74: #{tpu_custom_call.1} parent=1 // pred_check
      _
    $region75: #{tpu_custom_call.1} parent=1 // pred_check_branch
      %129 = sbr.rel (0) target = $region77
    $region76: #{tpu_custom_call.1} parent=1 // pred_region
      %130 = dma.done [#allocation11], 16
    $region77: #{tpu_custom_call.1} parent=1 // pred_fallthru
      _
    // Predicated region
    $region78: #{tpu_custom_call.1} parent=1 // pred_check
      _
    $region79: #{tpu_custom_call.1} parent=1 // pred_check_branch
      %132 = sbr.rel (0) target = $region81
    $region80: #{tpu_custom_call.1} parent=1 // pred_region
      %133 = dma.done [#allocation14], 16
    $region81: #{tpu_custom_call.1} parent=1 // pred_fallthru
      _
    // Predicated region
    $region82: #{tpu_custom_call.1} parent=1 // pred_check
      _
    $region83: #{tpu_custom_call.1} parent=1 // pred_check_branch
      %135 = sbr.rel (0) target = $region85
    $region84: #{tpu_custom_call.1} parent=1 // pred_region
      %136 = dma.done [#allocation14], 16
    $region85: #{tpu_custom_call.1} parent=1 // pred_fallthru
      _
    %p138 = scmp.eq.s32.totalorder 0, 0
    // Predicated region
    $region86: #{tpu_custom_call.1} parent=1 // pred_check
      %p139 = pneg %p138
    $region87: #{tpu_custom_call.1} parent=1 // pred_check_branch
      %141 = sbr.rel (%p139) target = $region89
    $region88: #{tpu_custom_call.1} parent=1 // pred_region
      %v142 = vld [vmem:[#allocation4] sm:$0x3]
      %143 = vst [vmem:[#allocation2] sm:$0x3] %v142
      %v144 = vld [vmem:[#allocation7] sm:$0x3]
      %145 = vst [vmem:[#allocation3] sm:$0x3] %v144
    $region89: #{tpu_custom_call.1} parent=1 // pred_fallthru
      _
    %v146 = vld [vmem:[%s0] sm:$0xf]
    %v147 = vld [vmem:[%s0 + $0x4] sm:$0xf]
    %v148 = vld [vmem:[#allocation9] sm:$0xff]
    %v149 = vld [vmem:[#allocation9 + $0x8] sm:$0xff]
    %v150 = vld [vmem:[#allocation9 + $0x10] sm:$0xff]
    %v151 = vld [vmem:[#allocation9 + $0x18] sm:$0xff]
    %v152 = vld [vmem:[%s5] sm:$0xf]
    %v154 = vlaneseq
    %v155 = vshrl.u32 %v154, 7
    %v156 = vsub.s32 0, %v155
    %v157 = vrot.slane %v152, %v156
    %v158 = vlaneseq
    %v159 = vshrl.u32 %v158, 7
    %v160 = vsub.s32 1, %v159
    %v161 = vrot.slane %v152, %v160
    %v162 = vlaneseq
    %v163 = vshrl.u32 %v162, 7
    %v164 = vsub.s32 2, %v163
    %v165 = vrot.slane %v152, %v164
    %v166 = vlaneseq
    %v167 = vshrl.u32 %v166, 7
    %v168 = vsub.s32 3, %v167
    %v169 = vrot.slane %v152, %v168
    %v176 = vunpack.c.l.b16 %v146
    %v177 = vunpack.c.l.b16 %v147
    %v178 = vpack.c.b16 %v177, %v176
    %v183 = vunpack.c.l.b16 %v148
    %v184 = vunpack.c.h.b16 %v148
    %v185 = vunpack.c.l.b16 %v149
    %v186 = vunpack.c.h.b16 %v149
    %v187 = vunpack.c.l.b16 %v150
    %v188 = vunpack.c.h.b16 %v150
    %v189 = vunpack.c.l.b16 %v151
    %v190 = vunpack.c.h.b16 %v151
    %v191 = vpack.c.b16 %v187, %v183
    %v192 = vpack.c.b16 %v188, %v184
    %v193 = vpack.c.b16 %v189, %v185
    %v194 = vpack.c.b16 %v190, %v186
    %vm199 = vcmask 130048
    %v201 = vsel %vm199, %v178, 0
    %203 = vmatprep.subr.bf16.mxu0 0
    %204 = vmatpush1.bf16.msra.mxu0 0
    %205 = vmatprep.subr.bf16.mxu0 0
    %206 = vmatpush1.bf16.msra.mxu0 0
    %207 = vmatprep.subr.bf16.mxu0 0
    %208 = vmatpush1.bf16.msra.mxu0 0
    %209 = vmatprep.subr.bf16.mxu0 0
    %210 = vmatpush1.bf16.msra.mxu0 0
    %211 = vmatprep.subr.bf16.mxu0 0
    %212 = vmatpush1.bf16.msra.mxu0 0
    %213 = vmatprep.subr.bf16.mxu0 0
    %214 = vmatpush1.bf16.msra.mxu0 0
    %215 = vmatprep.subr.bf16.mxu0 0
    %216 = vmatpush1.bf16.msra.mxu0 0
    %217 = vmatprep.subr.bf16.mxu0 %v192
    %218 = vmatpush1.bf16.msra.mxu0 %v191
    %219 = vmatprep.subr.bf16.mxu0 0
    %220 = vmatpush2.bf16.msra.mxu0 0
    %221 = vmatprep.subr.bf16.mxu0 0
    %222 = vmatpush2.bf16.msra.mxu0 0
    %223 = vmatprep.subr.bf16.mxu0 0
    %224 = vmatpush2.bf16.msra.mxu0 0
    %225 = vmatprep.subr.bf16.mxu0 0
    %226 = vmatpush2.bf16.msra.mxu0 0
    %227 = vmatprep.subr.bf16.mxu0 0
    %228 = vmatpush2.bf16.msra.mxu0 0
    %229 = vmatprep.subr.bf16.mxu0 0
    %230 = vmatpush2.bf16.msra.mxu0 0
    %231 = vmatprep.subr.bf16.mxu0 0
    %232 = vmatpush2.bf16.msra.mxu0 0
    %233 = vmatprep.subr.bf16.mxu0 0
    %234 = vmatpush2.bf16.msra.mxu0 0
    %235 = vmatprep.mubr.bf16.mxu0 0
    %236 = vmatmul.mubr.bf16.gmra.mxu0 %v201
    %v237 = vpop.f32.mrf.mxu0
    %v238 = vadd.f32 %v157, %v237
    %v239 = vpop.f32.mrf.mxu0
    %v240 = vadd.f32 %v161, %v239
    %v241 = vpop.f32.mrf.mxu0
    %v242 = vadd.f32 %v157, %v241
    %v243 = vpop.f32.mrf.mxu0
    %v244 = vadd.f32 %v161, %v243
    %245 = vdwg.mxu0
    %246 = vmatprep.subr.bf16.mxu0 0
    %247 = vmatpush1.bf16.msra.mxu0 0
    %248 = vmatprep.subr.bf16.mxu0 0
    %249 = vmatpush1.bf16.msra.mxu0 0
    %250 = vmatprep.subr.bf16.mxu0 0
    %251 = vmatpush1.bf16.msra.mxu0 0
    %252 = vmatprep.subr.bf16.mxu0 0
    %253 = vmatpush1.bf16.msra.mxu0 0
    %254 = vmatprep.subr.bf16.mxu0 0
    %255 = vmatpush1.bf16.msra.mxu0 0
    %256 = vmatprep.subr.bf16.mxu0 0
    %257 = vmatpush1.bf16.msra.mxu0 0
    %258 = vmatprep.subr.bf16.mxu0 0
    %259 = vmatpush1.bf16.msra.mxu0 0
    %260 = vmatprep.subr.bf16.mxu0 %v194
    %261 = vmatpush1.bf16.msra.mxu0 %v193
    %262 = vmatprep.subr.bf16.mxu0 0
    %263 = vmatpush2.bf16.msra.mxu0 0
    %264 = vmatprep.subr.bf16.mxu0 0
    %265 = vmatpush2.bf16.msra.mxu0 0
    %266 = vmatprep.subr.bf16.mxu0 0
    %267 = vmatpush2.bf16.msra.mxu0 0
    %268 = vmatprep.subr.bf16.mxu0 0
    %269 = vmatpush2.bf16.msra.mxu0 0
    %270 = vmatprep.subr.bf16.mxu0 0
    %271 = vmatpush2.bf16.msra.mxu0 0
    %272 = vmatprep.subr.bf16.mxu0 0
    %273 = vmatpush2.bf16.msra.mxu0 0
    %274 = vmatprep.subr.bf16.mxu0 0
    %275 = vmatpush2.bf16.msra.mxu0 0
    %276 = vmatprep.subr.bf16.mxu0 0
    %277 = vmatpush2.bf16.msra.mxu0 0
    %278 = vmatprep.mubr.bf16.mxu0 0
    %279 = vmatmul.mubr.bf16.gmra.mxu0 %v201
    %v280 = vpop.f32.mrf.mxu0
    %v281 = vadd.f32 %v165, %v280
    %v282 = vpop.f32.mrf.mxu0
    %v283 = vadd.f32 %v169, %v282
    %v284 = vpop.f32.mrf.mxu0
    %v285 = vadd.f32 %v165, %v284
    %v286 = vpop.f32.mrf.mxu0
    %v287 = vadd.f32 %v169, %v286
    %288 = vdwg.mxu0
    %v289 = vld [vmem:[#allocation10] sm:$0xff]
    %v290 = vld [vmem:[#allocation10 + $0x8] sm:$0xff]
    %v291 = vld [vmem:[#allocation10 + $0x10] sm:$0xff]
    %v292 = vld [vmem:[#allocation10 + $0x18] sm:$0xff]
    %v293 = vld [vmem:[#allocation10 + $0x20] sm:$0xff]
    %v294 = vld [vmem:[#allocation10 + $0x28] sm:$0xff]
    %v295 = vld [vmem:[#allocation10 + $0x30] sm:$0xff]
    %v296 = vld [vmem:[#allocation10 + $0x38] sm:$0xff]
    %v297 = vld [vmem:[#allocation10 + $0x40] sm:$0xff]
    %v298 = vld [vmem:[#allocation10 + $0x48] sm:$0xff]
    %v299 = vld [vmem:[#allocation10 + $0x50] sm:$0xff]
    %v300 = vld [vmem:[#allocation10 + $0x58] sm:$0xff]
    %v301 = vld [vmem:[#allocation10 + $0x60] sm:$0xff]
    %v302 = vld [vmem:[#allocation10 + $0x68] sm:$0xff]
    %v303 = vld [vmem:[#allocation10 + $0x70] sm:$0xff]
    %v304 = vld [vmem:[#allocation10 + $0x78] sm:$0xff]
    %v305 = vld [vmem:[#allocation10 + $0x80] sm:$0xff]
    %v306 = vld [vmem:[#allocation10 + $0x88] sm:$0xff]
    %v307 = vld [vmem:[#allocation10 + $0x90] sm:$0xff]
    %v308 = vld [vmem:[#allocation10 + $0x98] sm:$0xff]
    %v309 = vld [vmem:[#allocation10 + $0xa0] sm:$0xff]
    %v310 = vld [vmem:[#allocation10 + $0xa8] sm:$0xff]
    %v311 = vld [vmem:[#allocation10 + $0xb0] sm:$0xff]
    %v312 = vld [vmem:[#allocation10 + $0xb8] sm:$0xff]
    %v313 = vld [vmem:[#allocation10 + $0xc0] sm:$0xff]
    %v314 = vld [vmem:[#allocation10 + $0xc8] sm:$0xff]
    %v315 = vld [vmem:[#allocation10 + $0xd0] sm:$0xff]
    %v316 = vld [vmem:[#allocation10 + $0xd8] sm:$0xff]
    %v317 = vld [vmem:[#allocation10 + $0xe0] sm:$0xff]
    %v318 = vld [vmem:[#allocation10 + $0xe8] sm:$0xff]
    %v319 = vld [vmem:[#allocation10 + $0xf0] sm:$0xff]
    %v320 = vld [vmem:[#allocation10 + $0xf8] sm:$0xff]
    %v321 = vld [vmem:[#allocation2] sm:$0x3]
    %v322 = vld [vmem:[#allocation3] sm:$0x3]
    %v323 = vpack.c.bf16 %v321, %v321
    %v356 = vunpack.c.l.b16 %v289
    %v357 = vunpack.c.h.b16 %v289
    %v358 = vunpack.c.l.b16 %v290
    %v359 = vunpack.c.h.b16 %v290
    %v360 = vunpack.c.l.b16 %v291
    %v361 = vunpack.c.h.b16 %v291
    %v362 = vunpack.c.l.b16 %v292
    %v363 = vunpack.c.h.b16 %v292
    %v364 = vunpack.c.l.b16 %v293
    %v365 = vunpack.c.h.b16 %v293
    %v366 = vunpack.c.l.b16 %v294
    %v367 = vunpack.c.h.b16 %v294
    %v368 = vunpack.c.l.b16 %v295
    %v369 = vunpack.c.h.b16 %v295
    %v370 = vunpack.c.l.b16 %v296
    %v371 = vunpack.c.h.b16 %v296
    %v372 = vunpack.c.l.b16 %v297
    %v373 = vunpack.c.h.b16 %v297
    %v374 = vunpack.c.l.b16 %v298
    %v375 = vunpack.c.h.b16 %v298
    %v376 = vunpack.c.l.b16 %v299
    %v377 = vunpack.c.h.b16 %v299
    %v378 = vunpack.c.l.b16 %v300
    %v379 = vunpack.c.h.b16 %v300
    %v380 = vunpack.c.l.b16 %v301
    %v381 = vunpack.c.h.b16 %v301
    %v382 = vunpack.c.l.b16 %v302
    %v383 = vunpack.c.h.b16 %v302
    %v384 = vunpack.c.l.b16 %v303
    %v385 = vunpack.c.h.b16 %v303
    %v386 = vunpack.c.l.b16 %v304
    %v387 = vunpack.c.h.b16 %v304
    %v388 = vunpack.c.l.b16 %v305
    %v389 = vunpack.c.h.b16 %v305
    %v390 = vunpack.c.l.b16 %v306
    %v391 = vunpack.c.h.b16 %v306
    %v392 = vunpack.c.l.b16 %v307
    %v393 = vunpack.c.h.b16 %v307
    %v394 = vunpack.c.l.b16 %v308
    %v395 = vunpack.c.h.b16 %v308
    %v396 = vunpack.c.l.b16 %v309
    %v397 = vunpack.c.h.b16 %v309
    %v398 = vunpack.c.l.b16 %v310
    %v399 = vunpack.c.h.b16 %v310
    %v400 = vunpack.c.l.b16 %v311
    %v401 = vunpack.c.h.b16 %v311
    %v402 = vunpack.c.l.b16 %v312
    %v403 = vunpack.c.h.b16 %v312
    %v404 = vunpack.c.l.b16 %v313
    %v405 = vunpack.c.h.b16 %v313
    %v406 = vunpack.c.l.b16 %v314
    %v407 = vunpack.c.h.b16 %v314
    %v408 = vunpack.c.l.b16 %v315
    %v409 = vunpack.c.h.b16 %v315
    %v410 = vunpack.c.l.b16 %v316
    %v411 = vunpack.c.h.b16 %v316
    %v412 = vunpack.c.l.b16 %v317
    %v413 = vunpack.c.h.b16 %v317
    %v414 = vunpack.c.l.b16 %v318
    %v415 = vunpack.c.h.b16 %v318
    %v416 = vunpack.c.l.b16 %v319
    %v417 = vunpack.c.h.b16 %v319
    %v418 = vunpack.c.l.b16 %v320
    %v419 = vunpack.c.h.b16 %v320
    %v420 = vpack.c.b16 %v360, %v356
    %v421 = vpack.c.b16 %v361, %v357
    %v422 = vpack.c.b16 %v362, %v358
    %v423 = vpack.c.b16 %v363, %v359
    %v424 = vpack.c.b16 %v368, %v364
    %v425 = vpack.c.b16 %v369, %v365
    %v426 = vpack.c.b16 %v370, %v366
    %v427 = vpack.c.b16 %v371, %v367
    %v428 = vpack.c.b16 %v376, %v372
    %v429 = vpack.c.b16 %v377, %v373
    %v430 = vpack.c.b16 %v378, %v374
    %v431 = vpack.c.b16 %v379, %v375
    %v432 = vpack.c.b16 %v384, %v380
    %v433 = vpack.c.b16 %v385, %v381
    %v434 = vpack.c.b16 %v386, %v382
    %v435 = vpack.c.b16 %v387, %v383
    %v436 = vpack.c.b16 %v392, %v388
    %v437 = vpack.c.b16 %v393, %v389
    %v438 = vpack.c.b16 %v394, %v390
    %v439 = vpack.c.b16 %v395, %v391
    %v440 = vpack.c.b16 %v400, %v396
    %v441 = vpack.c.b16 %v401, %v397
    %v442 = vpack.c.b16 %v402, %v398
    %v443 = vpack.c.b16 %v403, %v399
    %v444 = vpack.c.b16 %v408, %v404
    %v445 = vpack.c.b16 %v409, %v405
    %v446 = vpack.c.b16 %v410, %v406
    %v447 = vpack.c.b16 %v411, %v407
    %v448 = vpack.c.b16 %v416, %v412
    %v449 = vpack.c.b16 %v417, %v413
    %v450 = vpack.c.b16 %v418, %v414
    %v451 = vpack.c.b16 %v419, %v415
    %484 = vmatprep.subr.bf16.mxu0 %v449
    %485 = vmatpush1.bf16.msra.mxu0 %v448
    %486 = vmatprep.subr.bf16.mxu0 %v445
    %487 = vmatpush1.bf16.msra.mxu0 %v444
    %488 = vmatprep.subr.bf16.mxu0 %v441
    %489 = vmatpush1.bf16.msra.mxu0 %v440
    %490 = vmatprep.subr.bf16.mxu0 %v437
    %491 = vmatpush1.bf16.msra.mxu0 %v436
    %492 = vmatprep.subr.bf16.mxu0 %v433
    %493 = vmatpush1.bf16.msra.mxu0 %v432
    %494 = vmatprep.subr.bf16.mxu0 %v429
    %495 = vmatpush1.bf16.msra.mxu0 %v428
    %496 = vmatprep.subr.bf16.mxu0 %v425
    %497 = vmatpush1.bf16.msra.mxu0 %v424
    %498 = vmatprep.subr.bf16.mxu0 %v421
    %499 = vmatpush1.bf16.msra.mxu0 %v420
    %500 = vmatprep.subr.bf16.mxu0 0
    %501 = vmatpush2.bf16.msra.mxu0 0
    %502 = vmatprep.subr.bf16.mxu0 0
    %503 = vmatpush2.bf16.msra.mxu0 0
    %504 = vmatprep.subr.bf16.mxu0 0
    %505 = vmatpush2.bf16.msra.mxu0 0
    %506 = vmatprep.subr.bf16.mxu0 0
    %507 = vmatpush2.bf16.msra.mxu0 0
    %508 = vmatprep.subr.bf16.mxu0 0
    %509 = vmatpush2.bf16.msra.mxu0 0
    %510 = vmatprep.subr.bf16.mxu0 0
    %511 = vmatpush2.bf16.msra.mxu0 0
    %512 = vmatprep.subr.bf16.mxu0 0
    %513 = vmatpush2.bf16.msra.mxu0 0
    %514 = vmatprep.subr.bf16.mxu0 0
    %515 = vmatpush2.bf16.msra.mxu0 0
    %516 = vmatprep.mubr.bf16.mxu0 0
    %517 = vmatmul.mubr.bf16.gmra.mxu0 %v323
    %v518 = vpop.f32.mrf.mxu0
    %v519 = vadd.f32 0.0, %v518
    %v520 = vpop.f32.mrf.mxu0
    %v521 = vadd.f32 0.0, %v520
    %v522 = vpop.f32.mrf.mxu0
    %v523 = vpop.f32.mrf.mxu0
    %524 = vdwg.mxu0
    %525 = vmatprep.subr.bf16.mxu0 %v451
    %526 = vmatpush1.bf16.msra.mxu0 %v450
    %527 = vmatprep.subr.bf16.mxu0 %v447
    %528 = vmatpush1.bf16.msra.mxu0 %v446
    %529 = vmatprep.subr.bf16.mxu0 %v443
    %530 = vmatpush1.bf16.msra.mxu0 %v442
    %531 = vmatprep.subr.bf16.mxu0 %v439
    %532 = vmatpush1.bf16.msra.mxu0 %v438
    %533 = vmatprep.subr.bf16.mxu0 %v435
    %534 = vmatpush1.bf16.msra.mxu0 %v434
    %535 = vmatprep.subr.bf16.mxu0 %v431
    %536 = vmatpush1.bf16.msra.mxu0 %v430
    %537 = vmatprep.subr.bf16.mxu0 %v427
    %538 = vmatpush1.bf16.msra.mxu0 %v426
    %539 = vmatprep.subr.bf16.mxu0 %v423
    %540 = vmatpush1.bf16.msra.mxu0 %v422
    %541 = vmatprep.subr.bf16.mxu0 0
    %542 = vmatpush2.bf16.msra.mxu0 0
    %543 = vmatprep.subr.bf16.mxu0 0
    %544 = vmatpush2.bf16.msra.mxu0 0
    %545 = vmatprep.subr.bf16.mxu0 0
    %546 = vmatpush2.bf16.msra.mxu0 0
    %547 = vmatprep.subr.bf16.mxu0 0
    %548 = vmatpush2.bf16.msra.mxu0 0
    %549 = vmatprep.subr.bf16.mxu0 0
    %550 = vmatpush2.bf16.msra.mxu0 0
    %551 = vmatprep.subr.bf16.mxu0 0
    %552 = vmatpush2.bf16.msra.mxu0 0
    %553 = vmatprep.subr.bf16.mxu0 0
    %554 = vmatpush2.bf16.msra.mxu0 0
    %555 = vmatprep.subr.bf16.mxu0 0
    %556 = vmatpush2.bf16.msra.mxu0 0
    %557 = vmatprep.mubr.bf16.mxu0 0
    %558 = vmatmul.mubr.bf16.gmra.mxu0 %v323
    %v559 = vpop.f32.mrf.mxu0
    %v560 = vadd.f32 0.0, %v559
    %v561 = vpop.f32.mrf.mxu0
    %v562 = vadd.f32 0.0, %v561
    %v563 = vpop.f32.mrf.mxu0
    %v564 = vpop.f32.mrf.mxu0
    %565 = vdwg.mxu0
    %v566 = vadd.f32 %v238, %v519
    %v567 = vadd.f32 %v240, %v521
    %v568 = vadd.f32 %v281, %v560
    %v569 = vadd.f32 %v283, %v562
    %v570 = vxor.u32 %v566, 2147483648
    %v571 = vxor.u32 %v567, 2147483648
    %v572 = vxor.u32 %v568, 2147483648
    %v573 = vxor.u32 %v569, 2147483648
    %v574 = vmul.f32 %v570, 1.442695
    %v575 = vpow.pop %v574
    %v576 = vmul.f32 %v571, 1.442695
    %v577 = vpow.pop %v576
    %v578 = vmul.f32 %v572, 1.442695
    %v579 = vpow.pop %v578
    %v580 = vmul.f32 %v573, 1.442695
    %v581 = vpow.pop %v580
    %v582 = vadd.f32 %v575, 1.0
    %v583 = vadd.f32 %v577, 1.0
    %v584 = vadd.f32 %v579, 1.0
    %v585 = vadd.f32 %v581, 1.0
    %v586 = vrcp.pop %v582
    %v587 = vmul.f32 1.0, %v586
    %v588 = vrcp.pop %v583
    %v589 = vmul.f32 1.0, %v588
    %v590 = vrcp.pop %v584
    %v591 = vmul.f32 1.0, %v590
    %v592 = vrcp.pop %v585
    %v593 = vmul.f32 1.0, %v592
    %v594 = vmul.f32 %v591, 2.0
    %v595 = vsub.f32 %v594, 1.0
    %v596 = vmul.f32 %v589, %v322
    %v597 = vmul.f32 %v587, %v595
    %v598 = vadd.f32 %v596, %v597
    %v599 = vtanh.pop %v598
    %v600 = vmul.f32 %v593, %v599
    %v601 = vpack.c.bf16 %v600, %v600
    %602 = vmatprep.subr.bf16.mxu0 %v449
    %603 = vmatpush1.bf16.msra.mxu0 %v448
    %604 = vmatprep.subr.bf16.mxu0 %v445
    %605 = vmatpush1.bf16.msra.mxu0 %v444
    %606 = vmatprep.subr.bf16.mxu0 %v441
    %607 = vmatpush1.bf16.msra.mxu0 %v440
    %608 = vmatprep.subr.bf16.mxu0 %v437
    %609 = vmatpush1.bf16.msra.mxu0 %v436
    %610 = vmatprep.subr.bf16.mxu0 %v433
    %611 = vmatpush1.bf16.msra.mxu0 %v432
    %612 = vmatprep.subr.bf16.mxu0 %v429
    %613 = vmatpush1.bf16.msra.mxu0 %v428
    %614 = vmatprep.subr.bf16.mxu0 %v425
    %615 = vmatpush1.bf16.msra.mxu0 %v424
    %616 = vmatprep.subr.bf16.mxu0 %v421
    %617 = vmatpush1.bf16.msra.mxu0 %v420
    %618 = vmatprep.subr.bf16.mxu0 0
    %619 = vmatpush2.bf16.msra.mxu0 0
    %620 = vmatprep.subr.bf16.mxu0 0
    %621 = vmatpush2.bf16.msra.mxu0 0
    %622 = vmatprep.subr.bf16.mxu0 0
    %623 = vmatpush2.bf16.msra.mxu0 0
    %624 = vmatprep.subr.bf16.mxu0 0
    %625 = vmatpush2.bf16.msra.mxu0 0
    %626 = vmatprep.subr.bf16.mxu0 0
    %627 = vmatpush2.bf16.msra.mxu0 0
    %628 = vmatprep.subr.bf16.mxu0 0
    %629 = vmatpush2.bf16.msra.mxu0 0
    %630 = vmatprep.subr.bf16.mxu0 0
    %631 = vmatpush2.bf16.msra.mxu0 0
    %632 = vmatprep.subr.bf16.mxu0 0
    %633 = vmatpush2.bf16.msra.mxu0 0
    %634 = vmatprep.mubr.bf16.mxu0 0
    %635 = vmatmul.mubr.bf16.gmra.mxu0 %v601
    %v636 = vpop.f32.mrf.mxu0
    %v637 = vadd.f32 0.0, %v636
    %v638 = vpop.f32.mrf.mxu0
    %v639 = vadd.f32 0.0, %v638
    %v640 = vpop.f32.mrf.mxu0
    %v641 = vpop.f32.mrf.mxu0
    %642 = vdwg.mxu0
    %643 = vmatprep.subr.bf16.mxu0 %v451
    %644 = vmatpush1.bf16.msra.mxu0 %v450
    %645 = vmatprep.subr.bf16.mxu0 %v447
    %646 = vmatpush1.bf16.msra.mxu0 %v446
    %647 = vmatprep.subr.bf16.mxu0 %v443
    %648 = vmatpush1.bf16.msra.mxu0 %v442
    %649 = vmatprep.subr.bf16.mxu0 %v439
    %650 = vmatpush1.bf16.msra.mxu0 %v438
    %651 = vmatprep.subr.bf16.mxu0 %v435
    %652 = vmatpush1.bf16.msra.mxu0 %v434
    %653 = vmatprep.subr.bf16.mxu0 %v431
    %654 = vmatpush1.bf16.msra.mxu0 %v430
    %655 = vmatprep.subr.bf16.mxu0 %v427
    %656 = vmatpush1.bf16.msra.mxu0 %v426
    %657 = vmatprep.subr.bf16.mxu0 %v423
    %658 = vmatpush1.bf16.msra.mxu0 %v422
    %659 = vmatprep.subr.bf16.mxu0 0
    %660 = vmatpush2.bf16.msra.mxu0 0
    %661 = vmatprep.subr.bf16.mxu0 0
    %662 = vmatpush2.bf16.msra.mxu0 0
    %663 = vmatprep.subr.bf16.mxu0 0
    %664 = vmatpush2.bf16.msra.mxu0 0
    %665 = vmatprep.subr.bf16.mxu0 0
    %666 = vmatpush2.bf16.msra.mxu0 0
    %667 = vmatprep.subr.bf16.mxu0 0
    %668 = vmatpush2.bf16.msra.mxu0 0
    %669 = vmatprep.subr.bf16.mxu0 0
    %670 = vmatpush2.bf16.msra.mxu0 0
    %671 = vmatprep.subr.bf16.mxu0 0
    %672 = vmatpush2.bf16.msra.mxu0 0
    %673 = vmatprep.subr.bf16.mxu0 0
    %674 = vmatpush2.bf16.msra.mxu0 0
    %675 = vmatprep.mubr.bf16.mxu0 0
    %676 = vmatmul.mubr.bf16.gmra.mxu0 %v601
    %v677 = vpop.f32.mrf.mxu0
    %v678 = vadd.f32 0.0, %v677
    %v679 = vpop.f32.mrf.mxu0
    %v680 = vadd.f32 0.0, %v679
    %v681 = vpop.f32.mrf.mxu0
    %v682 = vpop.f32.mrf.mxu0
    %683 = vdwg.mxu0
    %v688 = vrot.slane %v637, 6
    %v689 = vrot.slane %v639, 6
    %v690 = vrot.slane %v678, 6
    %v691 = vrot.slane %v680, 6
    %v696 = vadd.f32 %v238, %v688
    %v697 = vadd.f32 %v240, %v689
    %v698 = vadd.f32 %v281, %v690
    %v699 = vadd.f32 %v283, %v691
    %v700 = vxor.u32 %v696, 2147483648
    %v701 = vxor.u32 %v697, 2147483648
    %v702 = vxor.u32 %v698, 2147483648
    %v703 = vxor.u32 %v699, 2147483648
    %v704 = vmul.f32 %v700, 1.442695
    %v705 = vpow.pop %v704
    %v706 = vmul.f32 %v701, 1.442695
    %v707 = vpow.pop %v706
    %v708 = vmul.f32 %v702, 1.442695
    %v709 = vpow.pop %v708
    %v710 = vmul.f32 %v703, 1.442695
    %v711 = vpow.pop %v710
    %v712 = vadd.f32 %v705, 1.0
    %v713 = vadd.f32 %v707, 1.0
    %v714 = vadd.f32 %v709, 1.0
    %v715 = vadd.f32 %v711, 1.0
    %v716 = vrcp.pop %v712
    %v717 = vmul.f32 1.0, %v716
    %v718 = vrcp.pop %v713
    %v719 = vmul.f32 1.0, %v718
    %v720 = vrcp.pop %v714
    %v721 = vmul.f32 1.0, %v720
    %v722 = vrcp.pop %v715
    %v723 = vmul.f32 1.0, %v722
    %v724 = vmul.f32 %v721, 2.0
    %v725 = vsub.f32 %v724, 1.0
    %v727 = vrot.slane %v598, 6
    %v729 = vmul.f32 %v719, %v727
    %v730 = vmul.f32 %v717, %v725
    %v731 = vadd.f32 %v729, %v730
    %v732 = vtanh.pop %v731
    %v733 = vmul.f32 %v723, %v732
    %v734 = vpack.c.bf16 %v733, %v733
    %v736 = vrot.slane %v734, 1
    %738 = vmatprep.subr.bf16.mxu0 %v449
    %739 = vmatpush1.bf16.msra.mxu0 %v448
    %740 = vmatprep.subr.bf16.mxu0 %v445
    %741 = vmatpush1.bf16.msra.mxu0 %v444
    %742 = vmatprep.subr.bf16.mxu0 %v441
    %743 = vmatpush1.bf16.msra.mxu0 %v440
    %744 = vmatprep.subr.bf16.mxu0 %v437
    %745 = vmatpush1.bf16.msra.mxu0 %v436
    %746 = vmatprep.subr.bf16.mxu0 %v433
    %747 = vmatpush1.bf16.msra.mxu0 %v432
    %748 = vmatprep.subr.bf16.mxu0 %v429
    %749 = vmatpush1.bf16.msra.mxu0 %v428
    %750 = vmatprep.subr.bf16.mxu0 %v425
    %751 = vmatpush1.bf16.msra.mxu0 %v424
    %752 = vmatprep.subr.bf16.mxu0 %v421
    %753 = vmatpush1.bf16.msra.mxu0 %v420
    %754 = vmatprep.subr.bf16.mxu0 0
    %755 = vmatpush2.bf16.msra.mxu0 0
    %756 = vmatprep.subr.bf16.mxu0 0
    %757 = vmatpush2.bf16.msra.mxu0 0
    %758 = vmatprep.subr.bf16.mxu0 0
    %759 = vmatpush2.bf16.msra.mxu0 0
    %760 = vmatprep.subr.bf16.mxu0 0
    %761 = vmatpush2.bf16.msra.mxu0 0
    %762 = vmatprep.subr.bf16.mxu0 0
    %763 = vmatpush2.bf16.msra.mxu0 0
    %764 = vmatprep.subr.bf16.mxu0 0
    %765 = vmatpush2.bf16.msra.mxu0 0
    %766 = vmatprep.subr.bf16.mxu0 0
    %767 = vmatpush2.bf16.msra.mxu0 0
    %768 = vmatprep.subr.bf16.mxu0 0
    %769 = vmatpush2.bf16.msra.mxu0 0
    %770 = vmatprep.mubr.bf16.mxu0 0
    %771 = vmatmul.mubr.bf16.gmra.mxu0 %v736
    %v772 = vpop.f32.mrf.mxu0
    %v773 = vadd.f32 0.0, %v772
    %v774 = vpop.f32.mrf.mxu0
    %v775 = vadd.f32 0.0, %v774
    %v776 = vpop.f32.mrf.mxu0
    %v777 = vpop.f32.mrf.mxu0
    %778 = vdwg.mxu0
    %779 = vmatprep.subr.bf16.mxu0 %v451
    %780 = vmatpush1.bf16.msra.mxu0 %v450
    %781 = vmatprep.subr.bf16.mxu0 %v447
    %782 = vmatpush1.bf16.msra.mxu0 %v446
    %783 = vmatprep.subr.bf16.mxu0 %v443
    %784 = vmatpush1.bf16.msra.mxu0 %v442
    %785 = vmatprep.subr.bf16.mxu0 %v439
    %786 = vmatpush1.bf16.msra.mxu0 %v438
    %787 = vmatprep.subr.bf16.mxu0 %v435
    %788 = vmatpush1.bf16.msra.mxu0 %v434
    %789 = vmatprep.subr.bf16.mxu0 %v431
    %790 = vmatpush1.bf16.msra.mxu0 %v430
    %791 = vmatprep.subr.bf16.mxu0 %v427
    %792 = vmatpush1.bf16.msra.mxu0 %v426
    %793 = vmatprep.subr.bf16.mxu0 %v423
    %794 = vmatpush1.bf16.msra.mxu0 %v422
    %795 = vmatprep.subr.bf16.mxu0 0
    %796 = vmatpush2.bf16.msra.mxu0 0
    %797 = vmatprep.subr.bf16.mxu0 0
    %798 = vmatpush2.bf16.msra.mxu0 0
    %799 = vmatprep.subr.bf16.mxu0 0
    %800 = vmatpush2.bf16.msra.mxu0 0
    %801 = vmatprep.subr.bf16.mxu0 0
    %802 = vmatpush2.bf16.msra.mxu0 0
    %803 = vmatprep.subr.bf16.mxu0 0
    %804 = vmatpush2.bf16.msra.mxu0 0
    %805 = vmatprep.subr.bf16.mxu0 0
    %806 = vmatpush2.bf16.msra.mxu0 0
    %807 = vmatprep.subr.bf16.mxu0 0
    %808 = vmatpush2.bf16.msra.mxu0 0
    %809 = vmatprep.subr.bf16.mxu0 0
    %810 = vmatpush2.bf16.msra.mxu0 0
    %811 = vmatprep.mubr.bf16.mxu0 0
    %812 = vmatmul.mubr.bf16.gmra.mxu0 %v736
    %v813 = vpop.f32.mrf.mxu0
    %v814 = vadd.f32 0.0, %v813
    %v815 = vpop.f32.mrf.mxu0
    %v816 = vadd.f32 0.0, %v815
    %v817 = vpop.f32.mrf.mxu0
    %v818 = vpop.f32.mrf.mxu0
    %819 = vdwg.mxu0
    %v824 = vrot.slane %v773, 4
    %v825 = vrot.slane %v775, 4
    %v826 = vrot.slane %v814, 4
    %v827 = vrot.slane %v816, 4
    %v832 = vadd.f32 %v238, %v824
    %v833 = vadd.f32 %v240, %v825
    %v834 = vadd.f32 %v281, %v826
    %v835 = vadd.f32 %v283, %v827
    %v836 = vxor.u32 %v832, 2147483648
    %v837 = vxor.u32 %v833, 2147483648
    %v838 = vxor.u32 %v834, 2147483648
    %v839 = vxor.u32 %v835, 2147483648
    %v840 = vmul.f32 %v836, 1.442695
    %v841 = vpow.pop %v840
    %v842 = vmul.f32 %v837, 1.442695
    %v843 = vpow.pop %v842
    %v844 = vmul.f32 %v838, 1.442695
    %v845 = vpow.pop %v844
    %v846 = vmul.f32 %v839, 1.442695
    %v847 = vpow.pop %v846
    %v848 = vadd.f32 %v841, 1.0
    %v849 = vadd.f32 %v843, 1.0
    %v850 = vadd.f32 %v845, 1.0
    %v851 = vadd.f32 %v847, 1.0
    %v852 = vrcp.pop %v848
    %v853 = vmul.f32 1.0, %v852
    %v854 = vrcp.pop %v849
    %v855 = vmul.f32 1.0, %v854
    %v856 = vrcp.pop %v850
    %v857 = vmul.f32 1.0, %v856
    %v858 = vrcp.pop %v851
    %v859 = vmul.f32 1.0, %v858
    %v860 = vmul.f32 %v857, 2.0
    %v861 = vsub.f32 %v860, 1.0
    %v863 = vrot.slane %v731, 6
    %v865 = vmul.f32 %v855, %v863
    %v866 = vmul.f32 %v853, %v861
    %v867 = vadd.f32 %v865, %v866
    %v868 = vtanh.pop %v867
    %v869 = vmul.f32 %v859, %v868
    %v870 = vpack.c.bf16 %v869, %v869
    %v872 = vrot.slane %v870, 2
    %874 = vmatprep.subr.bf16.mxu0 %v449
    %875 = vmatpush1.bf16.msra.mxu0 %v448
    %876 = vmatprep.subr.bf16.mxu0 %v445
    %877 = vmatpush1.bf16.msra.mxu0 %v444
    %878 = vmatprep.subr.bf16.mxu0 %v441
    %879 = vmatpush1.bf16.msra.mxu0 %v440
    %880 = vmatprep.subr.bf16.mxu0 %v437
    %881 = vmatpush1.bf16.msra.mxu0 %v436
    %882 = vmatprep.subr.bf16.mxu0 %v433
    %883 = vmatpush1.bf16.msra.mxu0 %v432
    %884 = vmatprep.subr.bf16.mxu0 %v429
    %885 = vmatpush1.bf16.msra.mxu0 %v428
    %886 = vmatprep.subr.bf16.mxu0 %v425
    %887 = vmatpush1.bf16.msra.mxu0 %v424
    %888 = vmatprep.subr.bf16.mxu0 %v421
    %889 = vmatpush1.bf16.msra.mxu0 %v420
    %890 = vmatprep.subr.bf16.mxu0 0
    %891 = vmatpush2.bf16.msra.mxu0 0
    %892 = vmatprep.subr.bf16.mxu0 0
    %893 = vmatpush2.bf16.msra.mxu0 0
    %894 = vmatprep.subr.bf16.mxu0 0
    %895 = vmatpush2.bf16.msra.mxu0 0
    %896 = vmatprep.subr.bf16.mxu0 0
    %897 = vmatpush2.bf16.msra.mxu0 0
    %898 = vmatprep.subr.bf16.mxu0 0
    %899 = vmatpush2.bf16.msra.mxu0 0
    %900 = vmatprep.subr.bf16.mxu0 0
    %901 = vmatpush2.bf16.msra.mxu0 0
    %902 = vmatprep.subr.bf16.mxu0 0
    %903 = vmatpush2.bf16.msra.mxu0 0
    %904 = vmatprep.subr.bf16.mxu0 0
    %905 = vmatpush2.bf16.msra.mxu0 0
    %906 = vmatprep.mubr.bf16.mxu0 0
    %907 = vmatmul.mubr.bf16.gmra.mxu0 %v872
    %v908 = vpop.f32.mrf.mxu0
    %v909 = vadd.f32 0.0, %v908
    %v910 = vpop.f32.mrf.mxu0
    %v911 = vadd.f32 0.0, %v910
    %v912 = vpop.f32.mrf.mxu0
    %v913 = vpop.f32.mrf.mxu0
    %914 = vdwg.mxu0
    %915 = vmatprep.subr.bf16.mxu0 %v451
    %916 = vmatpush1.bf16.msra.mxu0 %v450
    %917 = vmatprep.subr.bf16.mxu0 %v447
    %918 = vmatpush1.bf16.msra.mxu0 %v446
    %919 = vmatprep.subr.bf16.mxu0 %v443
    %920 = vmatpush1.bf16.msra.mxu0 %v442
    %921 = vmatprep.subr.bf16.mxu0 %v439
    %922 = vmatpush1.bf16.msra.mxu0 %v438
    %923 = vmatprep.subr.bf16.mxu0 %v435
    %924 = vmatpush1.bf16.msra.mxu0 %v434
    %925 = vmatprep.subr.bf16.mxu0 %v431
    %926 = vmatpush1.bf16.msra.mxu0 %v430
    %927 = vmatprep.subr.bf16.mxu0 %v427
    %928 = vmatpush1.bf16.msra.mxu0 %v426
    %929 = vmatprep.subr.bf16.mxu0 %v423
    %930 = vmatpush1.bf16.msra.mxu0 %v422
    %931 = vmatprep.subr.bf16.mxu0 0
    %932 = vmatpush2.bf16.msra.mxu0 0
    %933 = vmatprep.subr.bf16.mxu0 0
    %934 = vmatpush2.bf16.msra.mxu0 0
    %935 = vmatprep.subr.bf16.mxu0 0
    %936 = vmatpush2.bf16.msra.mxu0 0
    %937 = vmatprep.subr.bf16.mxu0 0
    %938 = vmatpush2.bf16.msra.mxu0 0
    %939 = vmatprep.subr.bf16.mxu0 0
    %940 = vmatpush2.bf16.msra.mxu0 0
    %941 = vmatprep.subr.bf16.mxu0 0
    %942 = vmatpush2.bf16.msra.mxu0 0
    %943 = vmatprep.subr.bf16.mxu0 0
    %944 = vmatpush2.bf16.msra.mxu0 0
    %945 = vmatprep.subr.bf16.mxu0 0
    %946 = vmatpush2.bf16.msra.mxu0 0
    %947 = vmatprep.mubr.bf16.mxu0 0
    %948 = vmatmul.mubr.bf16.gmra.mxu0 %v872
    %v949 = vpop.f32.mrf.mxu0
    %v950 = vadd.f32 0.0, %v949
    %v951 = vpop.f32.mrf.mxu0
    %v952 = vadd.f32 0.0, %v951
    %v953 = vpop.f32.mrf.mxu0
    %v954 = vpop.f32.mrf.mxu0
    %955 = vdwg.mxu0
    %v960 = vrot.slane %v909, 2
    %v961 = vrot.slane %v911, 2
    %v962 = vrot.slane %v950, 2
    %v963 = vrot.slane %v952, 2
    %v968 = vadd.f32 %v238, %v960
    %v969 = vadd.f32 %v240, %v961
    %v970 = vadd.f32 %v281, %v962
    %v971 = vadd.f32 %v283, %v963
    %v972 = vxor.u32 %v968, 2147483648
    %v973 = vxor.u32 %v969, 2147483648
    %v974 = vxor.u32 %v970, 2147483648
    %v975 = vxor.u32 %v971, 2147483648
    %v976 = vmul.f32 %v972, 1.442695
    %v977 = vpow.pop %v976
    %v978 = vmul.f32 %v973, 1.442695
    %v979 = vpow.pop %v978
    %v980 = vmul.f32 %v974, 1.442695
    %v981 = vpow.pop %v980
    %v982 = vmul.f32 %v975, 1.442695
    %v983 = vpow.pop %v982
    %v984 = vadd.f32 %v977, 1.0
    %v985 = vadd.f32 %v979, 1.0
    %v986 = vadd.f32 %v981, 1.0
    %v987 = vadd.f32 %v983, 1.0
    %v988 = vrcp.pop %v984
    %v989 = vmul.f32 1.0, %v988
    %v990 = vrcp.pop %v985
    %v991 = vmul.f32 1.0, %v990
    %v992 = vrcp.pop %v986
    %v993 = vmul.f32 1.0, %v992
    %v994 = vrcp.pop %v987
    %v995 = vmul.f32 1.0, %v994
    %v996 = vmul.f32 %v993, 2.0
    %v997 = vsub.f32 %v996, 1.0
    %v999 = vrot.slane %v867, 6
    %v1001 = vmul.f32 %v991, %v999
    %v1002 = vmul.f32 %v989, %v997
    %v1003 = vadd.f32 %v1001, %v1002
    %v1004 = vtanh.pop %v1003
    %v1005 = vmul.f32 %v995, %v1004
    %v1006 = vpack.c.bf16 %v1005, %v1005
    %v1008 = vrot.slane %v1006, 3
    %1010 = vmatprep.subr.bf16.mxu0 %v449
    %1011 = vmatpush1.bf16.msra.mxu0 %v448
    %1012 = vmatprep.subr.bf16.mxu0 %v445
    %1013 = vmatpush1.bf16.msra.mxu0 %v444
    %1014 = vmatprep.subr.bf16.mxu0 %v441
    %1015 = vmatpush1.bf16.msra.mxu0 %v440
    %1016 = vmatprep.subr.bf16.mxu0 %v437
    %1017 = vmatpush1.bf16.msra.mxu0 %v436
    %1018 = vmatprep.subr.bf16.mxu0 %v433
    %1019 = vmatpush1.bf16.msra.mxu0 %v432
    %1020 = vmatprep.subr.bf16.mxu0 %v429
    %1021 = vmatpush1.bf16.msra.mxu0 %v428
    %1022 = vmatprep.subr.bf16.mxu0 %v425
    %1023 = vmatpush1.bf16.msra.mxu0 %v424
    %1024 = vmatprep.subr.bf16.mxu0 %v421
    %1025 = vmatpush1.bf16.msra.mxu0 %v420
    %1026 = vmatprep.subr.bf16.mxu0 0
    %1027 = vmatpush2.bf16.msra.mxu0 0
    %1028 = vmatprep.subr.bf16.mxu0 0
    %1029 = vmatpush2.bf16.msra.mxu0 0
    %1030 = vmatprep.subr.bf16.mxu0 0
    %1031 = vmatpush2.bf16.msra.mxu0 0
    %1032 = vmatprep.subr.bf16.mxu0 0
    %1033 = vmatpush2.bf16.msra.mxu0 0
    %1034 = vmatprep.subr.bf16.mxu0 0
    %1035 = vmatpush2.bf16.msra.mxu0 0
    %1036 = vmatprep.subr.bf16.mxu0 0
    %1037 = vmatpush2.bf16.msra.mxu0 0
    %1038 = vmatprep.subr.bf16.mxu0 0
    %1039 = vmatpush2.bf16.msra.mxu0 0
    %1040 = vmatprep.subr.bf16.mxu0 0
    %1041 = vmatpush2.bf16.msra.mxu0 0
    %1042 = vmatprep.mubr.bf16.mxu0 0
    %1043 = vmatmul.mubr.bf16.gmra.mxu0 %v1008
    %v1044 = vpop.f32.mrf.mxu0
    %v1045 = vadd.f32 0.0, %v1044
    %v1046 = vpop.f32.mrf.mxu0
    %v1047 = vadd.f32 0.0, %v1046
    %v1048 = vpop.f32.mrf.mxu0
    %v1049 = vpop.f32.mrf.mxu0
    %1050 = vdwg.mxu0
    %1051 = vmatprep.subr.bf16.mxu0 %v451
    %1052 = vmatpush1.bf16.msra.mxu0 %v450
    %1053 = vmatprep.subr.bf16.mxu0 %v447
    %1054 = vmatpush1.bf16.msra.mxu0 %v446
    %1055 = vmatprep.subr.bf16.mxu0 %v443
    %1056 = vmatpush1.bf16.msra.mxu0 %v442
    %1057 = vmatprep.subr.bf16.mxu0 %v439
    %1058 = vmatpush1.bf16.msra.mxu0 %v438
    %1059 = vmatprep.subr.bf16.mxu0 %v435
    %1060 = vmatpush1.bf16.msra.mxu0 %v434
    %1061 = vmatprep.subr.bf16.mxu0 %v431
    %1062 = vmatpush1.bf16.msra.mxu0 %v430
    %1063 = vmatprep.subr.bf16.mxu0 %v427
    %1064 = vmatpush1.bf16.msra.mxu0 %v426
    %1065 = vmatprep.subr.bf16.mxu0 %v423
    %1066 = vmatpush1.bf16.msra.mxu0 %v422
    %1067 = vmatprep.subr.bf16.mxu0 0
    %1068 = vmatpush2.bf16.msra.mxu0 0
    %1069 = vmatprep.subr.bf16.mxu0 0
    %1070 = vmatpush2.bf16.msra.mxu0 0
    %1071 = vmatprep.subr.bf16.mxu0 0
    %1072 = vmatpush2.bf16.msra.mxu0 0
    %1073 = vmatprep.subr.bf16.mxu0 0
    %1074 = vmatpush2.bf16.msra.mxu0 0
    %1075 = vmatprep.subr.bf16.mxu0 0
    %1076 = vmatpush2.bf16.msra.mxu0 0
    %1077 = vmatprep.subr.bf16.mxu0 0
    %1078 = vmatpush2.bf16.msra.mxu0 0
    %1079 = vmatprep.subr.bf16.mxu0 0
    %1080 = vmatpush2.bf16.msra.mxu0 0
    %1081 = vmatprep.subr.bf16.mxu0 0
    %1082 = vmatpush2.bf16.msra.mxu0 0
    %1083 = vmatprep.mubr.bf16.mxu0 0
    %1084 = vmatmul.mubr.bf16.gmra.mxu0 %v1008
    %v1085 = vpop.f32.mrf.mxu0
    %v1086 = vadd.f32 0.0, %v1085
    %v1087 = vpop.f32.mrf.mxu0
    %v1088 = vadd.f32 0.0, %v1087
    %v1089 = vpop.f32.mrf.mxu0
    %v1090 = vpop.f32.mrf.mxu0
    %1091 = vdwg.mxu0
    %v1092 = vadd.f32 %v242, %v1045
    %v1093 = vadd.f32 %v244, %v1047
    %v1094 = vadd.f32 %v285, %v1086
    %v1095 = vadd.f32 %v287, %v1088
    %v1096 = vxor.u32 %v1092, 2147483648
    %v1097 = vxor.u32 %v1093, 2147483648
    %v1098 = vxor.u32 %v1094, 2147483648
    %v1099 = vxor.u32 %v1095, 2147483648
    %v1100 = vmul.f32 %v1096, 1.442695
    %v1101 = vpow.pop %v1100
    %v1102 = vmul.f32 %v1097, 1.442695
    %v1103 = vpow.pop %v1102
    %v1104 = vmul.f32 %v1098, 1.442695
    %v1105 = vpow.pop %v1104
    %v1106 = vmul.f32 %v1099, 1.442695
    %v1107 = vpow.pop %v1106
    %v1108 = vadd.f32 %v1101, 1.0
    %v1109 = vadd.f32 %v1103, 1.0
    %v1110 = vadd.f32 %v1105, 1.0
    %v1111 = vadd.f32 %v1107, 1.0
    %v1112 = vrcp.pop %v1108
    %v1113 = vmul.f32 1.0, %v1112
    %v1114 = vrcp.pop %v1109
    %v1115 = vmul.f32 1.0, %v1114
    %v1116 = vrcp.pop %v1110
    %v1117 = vmul.f32 1.0, %v1116
    %v1118 = vrcp.pop %v1111
    %v1119 = vmul.f32 1.0, %v1118
    %v1120 = vmul.f32 %v1117, 2.0
    %v1121 = vsub.f32 %v1120, 1.0
    %v1123 = vrot.slane %v1003, 6
    %v1125 = vmul.f32 %v1115, %v1123
    %v1126 = vmul.f32 %v1113, %v1121
    %v1127 = vadd.f32 %v1125, %v1126
    %v1128 = vtanh.pop %v1127
    %v1129 = vmul.f32 %v1119, %v1128
    %v1130 = vpack.c.bf16 %v1129, %v1129
    %1131 = vmatprep.subr.bf16.mxu0 %v449
    %1132 = vmatpush1.bf16.msra.mxu0 %v448
    %1133 = vmatprep.subr.bf16.mxu0 %v445
    %1134 = vmatpush1.bf16.msra.mxu0 %v444
    %1135 = vmatprep.subr.bf16.mxu0 %v441
    %1136 = vmatpush1.bf16.msra.mxu0 %v440
    %1137 = vmatprep.subr.bf16.mxu0 %v437
    %1138 = vmatpush1.bf16.msra.mxu0 %v436
    %1139 = vmatprep.subr.bf16.mxu0 %v433
    %1140 = vmatpush1.bf16.msra.mxu0 %v432
    %1141 = vmatprep.subr.bf16.mxu0 %v429
    %1142 = vmatpush1.bf16.msra.mxu0 %v428
    %1143 = vmatprep.subr.bf16.mxu0 %v425
    %1144 = vmatpush1.bf16.msra.mxu0 %v424
    %1145 = vmatprep.subr.bf16.mxu0 %v421
    %1146 = vmatpush1.bf16.msra.mxu0 %v420
    %1147 = vmatprep.subr.bf16.mxu0 0
    %1148 = vmatpush2.bf16.msra.mxu0 0
    %1149 = vmatprep.subr.bf16.mxu0 0
    %1150 = vmatpush2.bf16.msra.mxu0 0
    %1151 = vmatprep.subr.bf16.mxu0 0
    %1152 = vmatpush2.bf16.msra.mxu0 0
    %1153 = vmatprep.subr.bf16.mxu0 0
    %1154 = vmatpush2.bf16.msra.mxu0 0
    %1155 = vmatprep.subr.bf16.mxu0 0
    %1156 = vmatpush2.bf16.msra.mxu0 0
    %1157 = vmatprep.subr.bf16.mxu0 0
    %1158 = vmatpush2.bf16.msra.mxu0 0
    %1159 = vmatprep.subr.bf16.mxu0 0
    %1160 = vmatpush2.bf16.msra.mxu0 0
    %1161 = vmatprep.subr.bf16.mxu0 0
    %1162 = vmatpush2.bf16.msra.mxu0 0
    %1163 = vmatprep.mubr.bf16.mxu0 0
    %1164 = vmatmul.mubr.bf16.gmra.mxu0 %v1130
    %v1165 = vpop.f32.mrf.mxu0
    %v1166 = vadd.f32 0.0, %v1165
    %v1167 = vpop.f32.mrf.mxu0
    %v1168 = vadd.f32 0.0, %v1167
    %v1169 = vpop.f32.mrf.mxu0
    %v1170 = vpop.f32.mrf.mxu0
    %1171 = vdwg.mxu0
    %1172 = vmatprep.subr.bf16.mxu0 %v451
    %1173 = vmatpush1.bf16.msra.mxu0 %v450
    %1174 = vmatprep.subr.bf16.mxu0 %v447
    %1175 = vmatpush1.bf16.msra.mxu0 %v446
    %1176 = vmatprep.subr.bf16.mxu0 %v443
    %1177 = vmatpush1.bf16.msra.mxu0 %v442
    %1178 = vmatprep.subr.bf16.mxu0 %v439
    %1179 = vmatpush1.bf16.msra.mxu0 %v438
    %1180 = vmatprep.subr.bf16.mxu0 %v435
    %1181 = vmatpush1.bf16.msra.mxu0 %v434
    %1182 = vmatprep.subr.bf16.mxu0 %v431
    %1183 = vmatpush1.bf16.msra.mxu0 %v430
    %1184 = vmatprep.subr.bf16.mxu0 %v427
    %1185 = vmatpush1.bf16.msra.mxu0 %v426
    %1186 = vmatprep.subr.bf16.mxu0 %v423
    %1187 = vmatpush1.bf16.msra.mxu0 %v422
    %1188 = vmatprep.subr.bf16.mxu0 0
    %1189 = vmatpush2.bf16.msra.mxu0 0
    %1190 = vmatprep.subr.bf16.mxu0 0
    %1191 = vmatpush2.bf16.msra.mxu0 0
    %1192 = vmatprep.subr.bf16.mxu0 0
    %1193 = vmatpush2.bf16.msra.mxu0 0
    %1194 = vmatprep.subr.bf16.mxu0 0
    %1195 = vmatpush2.bf16.msra.mxu0 0
    %1196 = vmatprep.subr.bf16.mxu0 0
    %1197 = vmatpush2.bf16.msra.mxu0 0
    %1198 = vmatprep.subr.bf16.mxu0 0
    %1199 = vmatpush2.bf16.msra.mxu0 0
    %1200 = vmatprep.subr.bf16.mxu0 0
    %1201 = vmatpush2.bf16.msra.mxu0 0
    %1202 = vmatprep.subr.bf16.mxu0 0
    %1203 = vmatpush2.bf16.msra.mxu0 0
    %1204 = vmatprep.mubr.bf16.mxu0 0
    %1205 = vmatmul.mubr.bf16.gmra.mxu0 %v1130
    %v1206 = vpop.f32.mrf.mxu0
    %v1207 = vadd.f32 0.0, %v1206
    %v1208 = vpop.f32.mrf.mxu0
    %v1209 = vadd.f32 0.0, %v1208
    %v1210 = vpop.f32.mrf.mxu0
    %v1211 = vpop.f32.mrf.mxu0
    %1212 = vdwg.mxu0
    %v1217 = vrot.slane %v1166, 6
    %v1218 = vrot.slane %v1168, 6
    %v1219 = vrot.slane %v1207, 6
    %v1220 = vrot.slane %v1209, 6
    %v1225 = vadd.f32 %v242, %v1217
    %v1226 = vadd.f32 %v244, %v1218
    %v1227 = vadd.f32 %v285, %v1219
    %v1228 = vadd.f32 %v287, %v1220
    %v1229 = vxor.u32 %v1225, 2147483648
    %v1230 = vxor.u32 %v1226, 2147483648
    %v1231 = vxor.u32 %v1227, 2147483648
    %v1232 = vxor.u32 %v1228, 2147483648
    %v1233 = vmul.f32 %v1229, 1.442695
    %v1234 = vpow.pop %v1233
    %v1235 = vmul.f32 %v1230, 1.442695
    %v1236 = vpow.pop %v1235
    %v1237 = vmul.f32 %v1231, 1.442695
    %v1238 = vpow.pop %v1237
    %v1239 = vmul.f32 %v1232, 1.442695
    %v1240 = vpow.pop %v1239
    %v1241 = vadd.f32 %v1234, 1.0
    %v1242 = vadd.f32 %v1236, 1.0
    %v1243 = vadd.f32 %v1238, 1.0
    %v1244 = vadd.f32 %v1240, 1.0
    %v1245 = vrcp.pop %v1241
    %v1246 = vmul.f32 1.0, %v1245
    %v1247 = vrcp.pop %v1242
    %v1248 = vmul.f32 1.0, %v1247
    %v1249 = vrcp.pop %v1243
    %v1250 = vmul.f32 1.0, %v1249
    %v1251 = vrcp.pop %v1244
    %v1252 = vmul.f32 1.0, %v1251
    %v1253 = vmul.f32 %v1250, 2.0
    %v1254 = vsub.f32 %v1253, 1.0
    %v1256 = vrot.slane %v1127, 6
    %v1258 = vmul.f32 %v1248, %v1256
    %v1259 = vmul.f32 %v1246, %v1254
    %v1260 = vadd.f32 %v1258, %v1259
    %v1261 = vtanh.pop %v1260
    %v1262 = vmul.f32 %v1252, %v1261
    %v1263 = vpack.c.bf16 %v1262, %v1262
    %v1265 = vrot.slane %v1263, 1
    %1267 = vmatprep.subr.bf16.mxu0 %v449
    %1268 = vmatpush1.bf16.msra.mxu0 %v448
    %1269 = vmatprep.subr.bf16.mxu0 %v445
    %1270 = vmatpush1.bf16.msra.mxu0 %v444
    %1271 = vmatprep.subr.bf16.mxu0 %v441
    %1272 = vmatpush1.bf16.msra.mxu0 %v440
    %1273 = vmatprep.subr.bf16.mxu0 %v437
    %1274 = vmatpush1.bf16.msra.mxu0 %v436
    %1275 = vmatprep.subr.bf16.mxu0 %v433
    %1276 = vmatpush1.bf16.msra.mxu0 %v432
    %1277 = vmatprep.subr.bf16.mxu0 %v429
    %1278 = vmatpush1.bf16.msra.mxu0 %v428
    %1279 = vmatprep.subr.bf16.mxu0 %v425
    %1280 = vmatpush1.bf16.msra.mxu0 %v424
    %1281 = vmatprep.subr.bf16.mxu0 %v421
    %1282 = vmatpush1.bf16.msra.mxu0 %v420
    %1283 = vmatprep.subr.bf16.mxu0 0
    %1284 = vmatpush2.bf16.msra.mxu0 0
    %1285 = vmatprep.subr.bf16.mxu0 0
    %1286 = vmatpush2.bf16.msra.mxu0 0
    %1287 = vmatprep.subr.bf16.mxu0 0
    %1288 = vmatpush2.bf16.msra.mxu0 0
    %1289 = vmatprep.subr.bf16.mxu0 0
    %1290 = vmatpush2.bf16.msra.mxu0 0
    %1291 = vmatprep.subr.bf16.mxu0 0
    %1292 = vmatpush2.bf16.msra.mxu0 0
    %1293 = vmatprep.subr.bf16.mxu0 0
    %1294 = vmatpush2.bf16.msra.mxu0 0
    %1295 = vmatprep.subr.bf16.mxu0 0
    %1296 = vmatpush2.bf16.msra.mxu0 0
    %1297 = vmatprep.subr.bf16.mxu0 0
    %1298 = vmatpush2.bf16.msra.mxu0 0
    %1299 = vmatprep.mubr.bf16.mxu0 0
    %1300 = vmatmul.mubr.bf16.gmra.mxu0 %v1265
    %v1301 = vpop.f32.mrf.mxu0
    %v1302 = vadd.f32 0.0, %v1301
    %v1303 = vpop.f32.mrf.mxu0
    %v1304 = vadd.f32 0.0, %v1303
    %v1305 = vpop.f32.mrf.mxu0
    %v1306 = vpop.f32.mrf.mxu0
    %1307 = vdwg.mxu0
    %1308 = vmatprep.subr.bf16.mxu0 %v451
    %1309 = vmatpush1.bf16.msra.mxu0 %v450
    %1310 = vmatprep.subr.bf16.mxu0 %v447
    %1311 = vmatpush1.bf16.msra.mxu0 %v446
    %1312 = vmatprep.subr.bf16.mxu0 %v443
    %1313 = vmatpush1.bf16.msra.mxu0 %v442
    %1314 = vmatprep.subr.bf16.mxu0 %v439
    %1315 = vmatpush1.bf16.msra.mxu0 %v438
    %1316 = vmatprep.subr.bf16.mxu0 %v435
    %1317 = vmatpush1.bf16.msra.mxu0 %v434
    %1318 = vmatprep.subr.bf16.mxu0 %v431
    %1319 = vmatpush1.bf16.msra.mxu0 %v430
    %1320 = vmatprep.subr.bf16.mxu0 %v427
    %1321 = vmatpush1.bf16.msra.mxu0 %v426
    %1322 = vmatprep.subr.bf16.mxu0 %v423
    %1323 = vmatpush1.bf16.msra.mxu0 %v422
    %1324 = vmatprep.subr.bf16.mxu0 0
    %1325 = vmatpush2.bf16.msra.mxu0 0
    %1326 = vmatprep.subr.bf16.mxu0 0
    %1327 = vmatpush2.bf16.msra.mxu0 0
    %1328 = vmatprep.subr.bf16.mxu0 0
    %1329 = vmatpush2.bf16.msra.mxu0 0
    %1330 = vmatprep.subr.bf16.mxu0 0
    %1331 = vmatpush2.bf16.msra.mxu0 0
    %1332 = vmatprep.subr.bf16.mxu0 0
    %1333 = vmatpush2.bf16.msra.mxu0 0
    %1334 = vmatprep.subr.bf16.mxu0 0
    %1335 = vmatpush2.bf16.msra.mxu0 0
    %1336 = vmatprep.subr.bf16.mxu0 0
    %1337 = vmatpush2.bf16.msra.mxu0 0
    %1338 = vmatprep.subr.bf16.mxu0 0
    %1339 = vmatpush2.bf16.msra.mxu0 0
    %1340 = vmatprep.mubr.bf16.mxu0 0
    %1341 = vmatmul.mubr.bf16.gmra.mxu0 %v1265
    %v1342 = vpop.f32.mrf.mxu0
    %v1343 = vadd.f32 0.0, %v1342
    %v1344 = vpop.f32.mrf.mxu0
    %v1345 = vadd.f32 0.0, %v1344
    %v1346 = vpop.f32.mrf.mxu0
    %v1347 = vpop.f32.mrf.mxu0
    %1348 = vdwg.mxu0
    %v1353 = vrot.slane %v1302, 4
    %v1354 = vrot.slane %v1304, 4
    %v1355 = vrot.slane %v1343, 4
    %v1356 = vrot.slane %v1345, 4
    %v1361 = vadd.f32 %v242, %v1353
    %v1362 = vadd.f32 %v244, %v1354
    %v1363 = vadd.f32 %v285, %v1355
    %v1364 = vadd.f32 %v287, %v1356
    %v1365 = vxor.u32 %v1361, 2147483648
    %v1366 = vxor.u32 %v1362, 2147483648
    %v1367 = vxor.u32 %v1363, 2147483648
    %v1368 = vxor.u32 %v1364, 2147483648
    %v1369 = vmul.f32 %v1365, 1.442695
    %v1370 = vpow.pop %v1369
    %v1371 = vmul.f32 %v1366, 1.442695
    %v1372 = vpow.pop %v1371
    %v1373 = vmul.f32 %v1367, 1.442695
    %v1374 = vpow.pop %v1373
    %v1375 = vmul.f32 %v1368, 1.442695
    %v1376 = vpow.pop %v1375
    %v1377 = vadd.f32 %v1370, 1.0
    %v1378 = vadd.f32 %v1372, 1.0
    %v1379 = vadd.f32 %v1374, 1.0
    %v1380 = vadd.f32 %v1376, 1.0
    %v1381 = vrcp.pop %v1377
    %v1382 = vmul.f32 1.0, %v1381
    %v1383 = vrcp.pop %v1378
    %v1384 = vmul.f32 1.0, %v1383
    %v1385 = vrcp.pop %v1379
    %v1386 = vmul.f32 1.0, %v1385
    %v1387 = vrcp.pop %v1380
    %v1388 = vmul.f32 1.0, %v1387
    %v1389 = vmul.f32 %v1386, 2.0
    %v1390 = vsub.f32 %v1389, 1.0
    %v1392 = vrot.slane %v1260, 6
    %v1394 = vmul.f32 %v1384, %v1392
    %v1395 = vmul.f32 %v1382, %v1390
    %v1396 = vadd.f32 %v1394, %v1395
    %v1397 = vtanh.pop %v1396
    %v1398 = vmul.f32 %v1388, %v1397
    %v1399 = vpack.c.bf16 %v1398, %v1398
    %v1401 = vrot.slane %v1399, 2
    %1403 = vmatprep.subr.bf16.mxu0 %v449
    %1404 = vmatpush1.bf16.msra.mxu0 %v448
    %1405 = vmatprep.subr.bf16.mxu0 %v445
    %1406 = vmatpush1.bf16.msra.mxu0 %v444
    %1407 = vmatprep.subr.bf16.mxu0 %v441
    %1408 = vmatpush1.bf16.msra.mxu0 %v440
    %1409 = vmatprep.subr.bf16.mxu0 %v437
    %1410 = vmatpush1.bf16.msra.mxu0 %v436
    %1411 = vmatprep.subr.bf16.mxu0 %v433
    %1412 = vmatpush1.bf16.msra.mxu0 %v432
    %1413 = vmatprep.subr.bf16.mxu0 %v429
    %1414 = vmatpush1.bf16.msra.mxu0 %v428
    %1415 = vmatprep.subr.bf16.mxu0 %v425
    %1416 = vmatpush1.bf16.msra.mxu0 %v424
    %1417 = vmatprep.subr.bf16.mxu0 %v421
    %1418 = vmatpush1.bf16.msra.mxu0 %v420
    %1419 = vmatprep.subr.bf16.mxu0 0
    %1420 = vmatpush2.bf16.msra.mxu0 0
    %1421 = vmatprep.subr.bf16.mxu0 0
    %1422 = vmatpush2.bf16.msra.mxu0 0
    %1423 = vmatprep.subr.bf16.mxu0 0
    %1424 = vmatpush2.bf16.msra.mxu0 0
    %1425 = vmatprep.subr.bf16.mxu0 0
    %1426 = vmatpush2.bf16.msra.mxu0 0
    %1427 = vmatprep.subr.bf16.mxu0 0
    %1428 = vmatpush2.bf16.msra.mxu0 0
    %1429 = vmatprep.subr.bf16.mxu0 0
    %1430 = vmatpush2.bf16.msra.mxu0 0
    %1431 = vmatprep.subr.bf16.mxu0 0
    %1432 = vmatpush2.bf16.msra.mxu0 0
    %1433 = vmatprep.subr.bf16.mxu0 0
    %1434 = vmatpush2.bf16.msra.mxu0 0
    %1435 = vmatprep.mubr.bf16.mxu0 0
    %1436 = vmatmul.mubr.bf16.gmra.mxu0 %v1401
    %v1437 = vpop.f32.mrf.mxu0
    %v1438 = vadd.f32 0.0, %v1437
    %v1439 = vpop.f32.mrf.mxu0
    %v1440 = vadd.f32 0.0, %v1439
    %v1441 = vpop.f32.mrf.mxu0
    %v1442 = vpop.f32.mrf.mxu0
    %1443 = vdwg.mxu0
    %1444 = vmatprep.subr.bf16.mxu0 %v451
    %1445 = vmatpush1.bf16.msra.mxu0 %v450
    %1446 = vmatprep.subr.bf16.mxu0 %v447
    %1447 = vmatpush1.bf16.msra.mxu0 %v446
    %1448 = vmatprep.subr.bf16.mxu0 %v443
    %1449 = vmatpush1.bf16.msra.mxu0 %v442
    %1450 = vmatprep.subr.bf16.mxu0 %v439
    %1451 = vmatpush1.bf16.msra.mxu0 %v438
    %1452 = vmatprep.subr.bf16.mxu0 %v435
    %1453 = vmatpush1.bf16.msra.mxu0 %v434
    %1454 = vmatprep.subr.bf16.mxu0 %v431
    %1455 = vmatpush1.bf16.msra.mxu0 %v430
    %1456 = vmatprep.subr.bf16.mxu0 %v427
    %1457 = vmatpush1.bf16.msra.mxu0 %v426
    %1458 = vmatprep.subr.bf16.mxu0 %v423
    %1459 = vmatpush1.bf16.msra.mxu0 %v422
    %1460 = vmatprep.subr.bf16.mxu0 0
    %1461 = vmatpush2.bf16.msra.mxu0 0
    %1462 = vmatprep.subr.bf16.mxu0 0
    %1463 = vmatpush2.bf16.msra.mxu0 0
    %1464 = vmatprep.subr.bf16.mxu0 0
    %1465 = vmatpush2.bf16.msra.mxu0 0
    %1466 = vmatprep.subr.bf16.mxu0 0
    %1467 = vmatpush2.bf16.msra.mxu0 0
    %1468 = vmatprep.subr.bf16.mxu0 0
    %1469 = vmatpush2.bf16.msra.mxu0 0
    %1470 = vmatprep.subr.bf16.mxu0 0
    %1471 = vmatpush2.bf16.msra.mxu0 0
    %1472 = vmatprep.subr.bf16.mxu0 0
    %1473 = vmatpush2.bf16.msra.mxu0 0
    %1474 = vmatprep.subr.bf16.mxu0 0
    %1475 = vmatpush2.bf16.msra.mxu0 0
    %1476 = vmatprep.mubr.bf16.mxu0 0
    %1477 = vmatmul.mubr.bf16.gmra.mxu0 %v1401
    %v1478 = vpop.f32.mrf.mxu0
    %v1479 = vadd.f32 0.0, %v1478
    %v1480 = vpop.f32.mrf.mxu0
    %v1481 = vadd.f32 0.0, %v1480
    %v1482 = vpop.f32.mrf.mxu0
    %v1483 = vpop.f32.mrf.mxu0
    %1484 = vdwg.mxu0
    %v1489 = vrot.slane %v1438, 2
    %v1490 = vrot.slane %v1440, 2
    %v1491 = vrot.slane %v1479, 2
    %v1492 = vrot.slane %v1481, 2
    %v1497 = vadd.f32 %v242, %v1489
    %v1498 = vadd.f32 %v244, %v1490
    %v1499 = vadd.f32 %v285, %v1491
    %v1500 = vadd.f32 %v287, %v1492
    %v1501 = vxor.u32 %v1497, 2147483648
    %v1502 = vxor.u32 %v1498, 2147483648
    %v1503 = vxor.u32 %v1499, 2147483648
    %v1504 = vxor.u32 %v1500, 2147483648
    %v1505 = vmul.f32 %v1501, 1.442695
    %v1506 = vpow.pop %v1505
    %v1507 = vmul.f32 %v1502, 1.442695
    %v1508 = vpow.pop %v1507
    %v1509 = vmul.f32 %v1503, 1.442695
    %v1510 = vpow.pop %v1509
    %v1511 = vmul.f32 %v1504, 1.442695
    %v1512 = vpow.pop %v1511
    %v1513 = vadd.f32 %v1506, 1.0
    %v1514 = vadd.f32 %v1508, 1.0
    %v1515 = vadd.f32 %v1510, 1.0
    %v1516 = vadd.f32 %v1512, 1.0
    %v1517 = vrcp.pop %v1513
    %v1518 = vmul.f32 1.0, %v1517
    %v1519 = vrcp.pop %v1514
    %v1520 = vmul.f32 1.0, %v1519
    %v1521 = vrcp.pop %v1515
    %v1522 = vmul.f32 1.0, %v1521
    %v1523 = vrcp.pop %v1516
    %v1524 = vmul.f32 1.0, %v1523
    %v1525 = vmul.f32 %v1522, 2.0
    %v1526 = vsub.f32 %v1525, 1.0
    %v1528 = vrot.slane %v1396, 6
    %v1530 = vmul.f32 %v1520, %v1528
    %v1531 = vmul.f32 %v1518, %v1526
    %v1532 = vadd.f32 %v1530, %v1531
    %v1533 = vtanh.pop %v1532
    %v1534 = vmul.f32 %v1524, %v1533
    %1535 = vst [vmem:[#allocation2 - $0x6] sm:$0xc0] %v1534
    %1536 = vst [vmem:[#allocation3 - $0x6] sm:$0xc0] %v1532
    // Predicated region
    $region90: #{tpu_custom_call.1} parent=1 // pred_check
      %p1537 = pneg %p138
    $region91: #{tpu_custom_call.1} parent=1 // pred_check_branch
      %1539 = sbr.rel (%p1537) target = $region93
    $region92: #{tpu_custom_call.1} parent=1 // pred_region
      %1540 = vst [vmem:[#allocation17 - $0x6] sm:$0xc0] %v1534
      %1541 = vst [vmem:[#allocation19 - $0x6] sm:$0xc0] %v1532
      %v1542 = vld [vmem:[#allocation12] sm:$0x1]
      %v1543 = vadd.f32 %v1542, 1e-05
      %v1544 = vrsqrt.pop %v1543
      %v1545 = vld [vmem:[%s8] sm:$0x1]
      %v1547 = vlaneseq
      %v1548 = vshrl.u32 %v1547, 7
      %v1549 = vsub.s32 0, %v1548
      %v1550 = vrot.slane %v1545, %v1549
      %v1552 = vsub.f32 %v1534, %v1550
      %v1554 = vlaneseq
      %v1555 = vshrl.u32 %v1554, 7
      %v1556 = vsub.s32 0, %v1555
      %v1557 = vrot.slane %v1544, %v1556
      %v1559 = vmul.f32 %v1552, %v1557
      %v1560 = vld [vmem:[%s6] sm:$0x1]
      %v1562 = vlaneseq
      %v1563 = vshrl.u32 %v1562, 7
      %v1564 = vsub.s32 0, %v1563
      %v1565 = vrot.slane %v1560, %v1564
      %v1567 = vmul.f32 %v1559, %v1565
      %v1568 = vld [vmem:[%s7] sm:$0x1]
      %v1570 = vlaneseq
      %v1571 = vshrl.u32 %v1570, 7
      %v1572 = vsub.s32 0, %v1571
      %v1573 = vrot.slane %v1568, %v1572
      %v1575 = vadd.f32 %v1567, %v1573
      %v1576 = vpack.c.bf16 %v1575, %v1575
      %v1577 = vld [vmem:[%s10] sm:$0xf]
      %v1578 = vld [vmem:[%s10 + $0x4] sm:$0xf]
      %v1579 = vld [vmem:[%s10 + $0x8] sm:$0xf]
      %v1580 = vld [vmem:[%s10 + $0xc] sm:$0xf]
      %v1581 = vld [vmem:[%s10 + $0x10] sm:$0xf]
      %v1582 = vld [vmem:[%s10 + $0x14] sm:$0xf]
      %v1583 = vld [vmem:[%s10 + $0x18] sm:$0xf]
      %v1584 = vld [vmem:[%s10 + $0x1c] sm:$0xf]
      %v1585 = vld [vmem:[%s10 + $0x20] sm:$0xf]
      %v1586 = vld [vmem:[%s10 + $0x24] sm:$0xf]
      %v1587 = vld [vmem:[%s10 + $0x28] sm:$0xf]
      %v1588 = vld [vmem:[%s10 + $0x2c] sm:$0xf]
      %v1589 = vld [vmem:[%s10 + $0x30] sm:$0xf]
      %v1590 = vld [vmem:[%s10 + $0x34] sm:$0xf]
      %v1591 = vld [vmem:[%s10 + $0x38] sm:$0xf]
      %v1592 = vld [vmem:[%s10 + $0x3c] sm:$0xf]
      %v1593 = vld [vmem:[#allocation13] sm:$0x1]
      %v1595 = vlaneseq
      %v1596 = vshrl.u32 %v1595, 7
      %v1597 = vsub.s32 0, %v1596
      %v1598 = vrot.slane %v1593, %v1597
      %v1601 = vrot.slane %v1576, 3
      %v1619 = vunpack.c.l.b16 %v1577
      %v1620 = vunpack.c.l.b16 %v1578
      %v1621 = vunpack.c.l.b16 %v1579
      %v1622 = vunpack.c.l.b16 %v1580
      %v1623 = vunpack.c.l.b16 %v1581
      %v1624 = vunpack.c.l.b16 %v1582
      %v1625 = vunpack.c.l.b16 %v1583
      %v1626 = vunpack.c.l.b16 %v1584
      %v1627 = vunpack.c.l.b16 %v1585
      %v1628 = vunpack.c.l.b16 %v1586
      %v1629 = vunpack.c.l.b16 %v1587
      %v1630 = vunpack.c.l.b16 %v1588
      %v1631 = vunpack.c.l.b16 %v1589
      %v1632 = vunpack.c.l.b16 %v1590
      %v1633 = vunpack.c.l.b16 %v1591
      %v1634 = vunpack.c.l.b16 %v1592
      %v1635 = vpack.c.b16 %v1620, %v1619
      %v1636 = vpack.c.b16 %v1622, %v1621
      %v1637 = vpack.c.b16 %v1624, %v1623
      %v1638 = vpack.c.b16 %v1626, %v1625
      %v1639 = vpack.c.b16 %v1628, %v1627
      %v1640 = vpack.c.b16 %v1630, %v1629
      %v1641 = vpack.c.b16 %v1632, %v1631
      %v1642 = vpack.c.b16 %v1634, %v1633
      %1651 = vmatprep.subr.bf16.mxu0 0
      %1652 = vmatpush1.bf16.msra.mxu0 %v1642
      %1653 = vmatprep.subr.bf16.mxu0 0
      %1654 = vmatpush1.bf16.msra.mxu0 %v1641
      %1655 = vmatprep.subr.bf16.mxu0 0
      %1656 = vmatpush1.bf16.msra.mxu0 %v1640
      %1657 = vmatprep.subr.bf16.mxu0 0
      %1658 = vmatpush1.bf16.msra.mxu0 %v1639
      %1659 = vmatprep.subr.bf16.mxu0 0
      %1660 = vmatpush1.bf16.msra.mxu0 %v1638
      %1661 = vmatprep.subr.bf16.mxu0 0
      %1662 = vmatpush1.bf16.msra.mxu0 %v1637
      %1663 = vmatprep.subr.bf16.mxu0 0
      %1664 = vmatpush1.bf16.msra.mxu0 %v1636
      %1665 = vmatprep.subr.bf16.mxu0 0
      %1666 = vmatpush1.bf16.msra.mxu0 %v1635
      %1667 = vmatprep.subr.bf16.mxu0 0
      %1668 = vmatpush2.bf16.msra.mxu0 0
      %1669 = vmatprep.subr.bf16.mxu0 0
      %1670 = vmatpush2.bf16.msra.mxu0 0
      %1671 = vmatprep.subr.bf16.mxu0 0
      %1672 = vmatpush2.bf16.msra.mxu0 0
      %1673 = vmatprep.subr.bf16.mxu0 0
      %1674 = vmatpush2.bf16.msra.mxu0 0
      %1675 = vmatprep.subr.bf16.mxu0 0
      %1676 = vmatpush2.bf16.msra.mxu0 0
      %1677 = vmatprep.subr.bf16.mxu0 0
      %1678 = vmatpush2.bf16.msra.mxu0 0
      %1679 = vmatprep.subr.bf16.mxu0 0
      %1680 = vmatpush2.bf16.msra.mxu0 0
      %1681 = vmatprep.subr.bf16.mxu0 0
      %1682 = vmatpush2.bf16.msra.mxu0 0
      %1683 = vmatprep.mubr.bf16.mxu0 0
      %1684 = vmatmul.mubr.bf16.gmra.mxu0 %v1601
      %v1685 = vpop.f32.mrf.mxu0
      %v1686 = vadd.f32 %v1598, %v1685
      %v1687 = vpop.f32.mrf.mxu0
      %v1688 = vpop.f32.mrf.mxu0
      %v1689 = vpop.f32.mrf.mxu0
      %1690 = vdwg.mxu0
      %v1691 = vmax.f32 %v1686, 0.0
      %v1692 = vsub.f32 %v1691, %v1550
      %v1693 = vmul.f32 %v1692, %v1557
      %v1694 = vmul.f32 %v1693, %v1565
      %v1695 = vadd.f32 %v1694, %v1573
      %v1696 = vpack.c.bf16 %v1695, %v1695
      %v1697 = vld [vmem:[%s12] sm:$0xf]
      %v1698 = vld [vmem:[%s12 + $0x4] sm:$0xf]
      %v1699 = vld [vmem:[%s12 + $0x8] sm:$0xf]
      %v1700 = vld [vmem:[%s12 + $0xc] sm:$0xf]
      %v1701 = vld [vmem:[%s12 + $0x10] sm:$0xf]
      %v1702 = vld [vmem:[%s12 + $0x14] sm:$0xf]
      %v1703 = vld [vmem:[%s12 + $0x18] sm:$0xf]
      %v1704 = vld [vmem:[%s12 + $0x1c] sm:$0xf]
      %v1705 = vld [vmem:[%s12 + $0x20] sm:$0xf]
      %v1706 = vld [vmem:[%s12 + $0x24] sm:$0xf]
      %v1707 = vld [vmem:[%s12 + $0x28] sm:$0xf]
      %v1708 = vld [vmem:[%s12 + $0x2c] sm:$0xf]
      %v1709 = vld [vmem:[%s12 + $0x30] sm:$0xf]
      %v1710 = vld [vmem:[%s12 + $0x34] sm:$0xf]
      %v1711 = vld [vmem:[%s12 + $0x38] sm:$0xf]
      %v1712 = vld [vmem:[%s12 + $0x3c] sm:$0xf]
      %v1713 = vld [vmem:[#allocation15] sm:$0x1]
      %v1715 = vlaneseq
      %v1716 = vshrl.u32 %v1715, 7
      %v1717 = vsub.s32 0, %v1716
      %v1718 = vrot.slane %v1713, %v1717
      %v1736 = vunpack.c.l.b16 %v1697
      %v1737 = vunpack.c.l.b16 %v1698
      %v1738 = vunpack.c.l.b16 %v1699
      %v1739 = vunpack.c.l.b16 %v1700
      %v1740 = vunpack.c.l.b16 %v1701
      %v1741 = vunpack.c.l.b16 %v1702
      %v1742 = vunpack.c.l.b16 %v1703
      %v1743 = vunpack.c.l.b16 %v1704
      %v1744 = vunpack.c.l.b16 %v1705
      %v1745 = vunpack.c.l.b16 %v1706
      %v1746 = vunpack.c.l.b16 %v1707
      %v1747 = vunpack.c.l.b16 %v1708
      %v1748 = vunpack.c.l.b16 %v1709
      %v1749 = vunpack.c.l.b16 %v1710
      %v1750 = vunpack.c.l.b16 %v1711
      %v1751 = vunpack.c.l.b16 %v1712
      %v1752 = vpack.c.b16 %v1737, %v1736
      %v1753 = vpack.c.b16 %v1739, %v1738
      %v1754 = vpack.c.b16 %v1741, %v1740
      %v1755 = vpack.c.b16 %v1743, %v1742
      %v1756 = vpack.c.b16 %v1745, %v1744
      %v1757 = vpack.c.b16 %v1747, %v1746
      %v1758 = vpack.c.b16 %v1749, %v1748
      %v1759 = vpack.c.b16 %v1751, %v1750
      %1768 = vmatprep.subr.bf16.mxu0 0
      %1769 = vmatpush1.bf16.msra.mxu0 %v1759
      %1770 = vmatprep.subr.bf16.mxu0 0
      %1771 = vmatpush1.bf16.msra.mxu0 %v1758
      %1772 = vmatprep.subr.bf16.mxu0 0
      %1773 = vmatpush1.bf16.msra.mxu0 %v1757
      %1774 = vmatprep.subr.bf16.mxu0 0
      %1775 = vmatpush1.bf16.msra.mxu0 %v1756
      %1776 = vmatprep.subr.bf16.mxu0 0
      %1777 = vmatpush1.bf16.msra.mxu0 %v1755
      %1778 = vmatprep.subr.bf16.mxu0 0
      %1779 = vmatpush1.bf16.msra.mxu0 %v1754
      %1780 = vmatprep.subr.bf16.mxu0 0
      %1781 = vmatpush1.bf16.msra.mxu0 %v1753
      %1782 = vmatprep.subr.bf16.mxu0 0
      %1783 = vmatpush1.bf16.msra.mxu0 %v1752
      %1784 = vmatprep.subr.bf16.mxu0 0
      %1785 = vmatpush2.bf16.msra.mxu0 0
      %1786 = vmatprep.subr.bf16.mxu0 0
      %1787 = vmatpush2.bf16.msra.mxu0 0
      %1788 = vmatprep.subr.bf16.mxu0 0
      %1789 = vmatpush2.bf16.msra.mxu0 0
      %1790 = vmatprep.subr.bf16.mxu0 0
      %1791 = vmatpush2.bf16.msra.mxu0 0
      %1792 = vmatprep.subr.bf16.mxu0 0
      %1793 = vmatpush2.bf16.msra.mxu0 0
      %1794 = vmatprep.subr.bf16.mxu0 0
      %1795 = vmatpush2.bf16.msra.mxu0 0
      %1796 = vmatprep.subr.bf16.mxu0 0
      %1797 = vmatpush2.bf16.msra.mxu0 0
      %1798 = vmatprep.subr.bf16.mxu0 0
      %1799 = vmatpush2.bf16.msra.mxu0 0
      %1800 = vmatprep.mubr.bf16.mxu0 0
      %1801 = vmatmul.mubr.bf16.gmra.mxu0 %v1696
      %v1802 = vpop.f32.mrf.mxu0
      %v1803 = vadd.f32 %v1718, %v1802
      %v1804 = vpop.f32.mrf.mxu0
      %v1805 = vpop.f32.mrf.mxu0
      %v1806 = vpop.f32.mrf.mxu0
      %1807 = vdwg.mxu0
      %v1808 = vtanh.pop %v1803
      %vm1809 = vcmask 25600
      %1810 = vst.msk [vmem:[#allocation16] sm:$0x3] %vm1809, %v1808
    $region93: #{tpu_custom_call.1} parent=1 // pred_fallthru
      _
    // Predicated region
    $region94: #{tpu_custom_call.1} parent=1 // pred_check
      _
    $region95: #{tpu_custom_call.1} parent=1 // pred_check_branch
      %1812 = sbr.rel (0) target = $region97
    $region96: #{tpu_custom_call.1} parent=1 // pred_region
      %s1814 = ssub.s32 32, 32
      %1815 = vsyncadd [#allocation6], %s1814
      %s1817 = sshll.u32 [#allocation16], 4
      %s1818 = int_to_ptr.vmem [resolvable:$true] %s1817
      %1820 = dma.vmem_to_hbm [thread:$0]  %s1818, 32, %s14, [#allocation6]
    $region97: #{tpu_custom_call.1} parent=1 // pred_fallthru
      _
    // Predicated region
    $region98: #{tpu_custom_call.1} parent=1 // pred_check
      _
    $region99: #{tpu_custom_call.1} parent=1 // pred_check_branch
      %1822 = sbr.rel (0) target = $region101
    $region100: #{tpu_custom_call.1} parent=1 // pred_region
      %s1824 = ssub.s32 32, 32
      %1825 = vsyncadd [#allocation18], %s1824
      %s1827 = sshll.u32 [#allocation17], 4
      %s1828 = int_to_ptr.vmem [resolvable:$true] %s1827
      %1830 = dma.vmem_to_hbm [thread:$0]  %s1828, 32, %s15, [#allocation18]
    $region101: #{tpu_custom_call.1} parent=1 // pred_fallthru
      _
    // Predicated region
    $region102: #{tpu_custom_call.1} parent=1 // pred_check
      _
    $region103: #{tpu_custom_call.1} parent=1 // pred_check_branch
      %1832 = sbr.rel (0) target = $region105
    $region104: #{tpu_custom_call.1} parent=1 // pred_region
      %s1834 = ssub.s32 32, 32
      %1835 = vsyncadd [#allocation18], %s1834
      %s1837 = sshll.u32 [#allocation19], 4
      %s1838 = int_to_ptr.vmem [resolvable:$true] %s1837
      %1840 = dma.vmem_to_hbm [thread:$0]  %s1838, 32, %s16, [#allocation18]
    $region105: #{tpu_custom_call.1} parent=1 // pred_fallthru
      _
    // Predicated region
    $region106: #{tpu_custom_call.1} parent=1 // pred_check
      _
    $region107: #{tpu_custom_call.1} parent=1 // pred_check_branch
      %1842 = sbr.rel (0) target = $region109
    $region108: #{tpu_custom_call.1} parent=1 // pred_region
      %1843 = dma.done [#allocation6], 32
    $region109: #{tpu_custom_call.1} parent=1 // pred_fallthru
      _
    // Predicated region
    $region110: #{tpu_custom_call.1} parent=1 // pred_check
      _
    $region111: #{tpu_custom_call.1} parent=1 // pred_check_branch
      %1845 = sbr.rel (0) target = $region113
    $region112: #{tpu_custom_call.1} parent=1 // pred_region
      %1846 = dma.done [#allocation18], 32
    $region113: #{tpu_custom_call.1} parent=1 // pred_fallthru
      _
    // Predicated region
    $region114: #{tpu_custom_call.1} parent=1 // pred_check
      _
    $region115: #{tpu_custom_call.1} parent=1 // pred_check_branch
      %1848 = sbr.rel (0) target = $region117
    $region116: #{tpu_custom_call.1} parent=1 // pred_region
      %1849 = dma.done [#allocation18], 32
    $region117: #{tpu_custom_call.1} parent=1 // pred_fallthru
      _
    %1850 = vsyncpa [#allocation5], 1
    %1851 = vsyncpa [#allocation8], 1
    %1852 = vsyncpa [#allocation11], 1
    %1853 = vsyncpa [#allocation14], 1
    %1854 = vsyncpa [#allocation6], 1
    %1855 = vsyncpa [#allocation18], 1

</llo_original>
